<compile_context>
chip_gen: v7x
topology: tpu7x:2x2x1
jax: 0.10.0
libtpu: 0.0.40
codegen_flags: <defaults>
</compile_context>

<pallas_src>
import functools
import math

import jax
import jax.numpy as jnp
from jax.experimental import pallas as pl
from jax.experimental.pallas import tpu as pltpu


# ----------------------------- small helpers -------------------------------

def _round_up(x, m):
    return ((x + m - 1) // m) * m


_VMEM_LIMIT_CACHE = []


def _vmem_limit_bytes():
    # Generation-aware VMEM budget: ~96 MiB on v5e/v6e (128 MiB physical),
    # ~48 MiB on v7x (64 MiB physical).  Conservative fallback if the query
    # is unavailable.
    if _VMEM_LIMIT_CACHE:
        return _VMEM_LIMIT_CACHE[0]
    cap = 64 * 1024 * 1024
    try:
        info = pltpu.get_tpu_info()
        cap = int(getattr(info, "vmem_capacity_bytes", cap))
    except Exception:
        cap = 64 * 1024 * 1024
    lim = min(100 * 1024 * 1024, (cap * 3) // 4)
    _VMEM_LIMIT_CACHE.append(lim)
    return lim


def _compiler_params(n_axes):
    return pltpu.CompilerParams(
        dimension_semantics=("parallel",) * n_axes,
        vmem_limit_bytes=_vmem_limit_bytes())


# ----------------------------- in-kernel math ------------------------------

_INV_SQRT2 = 0.7071067811865476


def _fast_recip(d):
    # EUP approximate reciprocal + one Newton-Raphson step: keeps the divide
    # off the VALU while staying ~eps^2 accurate (well inside the erf
    # polynomial's 1.5e-7 budget).
    r = pl.reciprocal(d, approx=True)
    return r * (2.0 - d * r)


def _erf(x):
    # A&S 7.1.26 polynomial erf (|err| <= 1.5e-7).
    # TODO(synk): swap to a native erf primitive if Mosaic exposes one.
    a1, a2, a3, a4, a5 = (0.254829592, -0.284496736, 1.421413741,
                          -1.453152027, 1.061405429)
    p = 0.3275911
    s = jnp.where(x >= 0.0, 1.0, -1.0)
    ax = jnp.abs(x)
    t = _fast_recip(1.0 + p * ax)
    poly = ((((a5 * t + a4) * t + a3) * t + a2) * t + a1) * t
    return s * (1.0 - poly * jnp.exp(-ax * ax))


def _gelu_exact(x):
    # erf-based GELU (matches torch.nn.GELU() default).
    return 0.5 * x * (1.0 + _erf(x * _INV_SQRT2))


# ------------------------------- kernels -----------------------------------

def _pw_in_kernel(x_ref, w_ref, b_ref, o_ref):
    # x_ref: (TM, C)   w_ref: (C, C) in activation dtype   b_ref: (1, C) f32
    y = jnp.dot(x_ref[...], w_ref[...], preferred_element_type=jnp.float32)
    y = y + b_ref[...].astype(jnp.float32)
    o_ref[...] = _gelu_exact(y).astype(o_ref.dtype)


def _dw_attn_kernel(x_ref, w0_ref, b0_ref, ws_ref, bs_ref, o_ref, p_ref, q_ref,
                    *, sh):
    # x_ref : (H, W, TC)  gelu(proj_1(x)) tile (batch dim squeezed by BlockSpec)
    # w0_ref: (25, 1, TC)  b0_ref: (1, 1, TC)   5x5 depthwise taps / bias
    # ws_ref: (49, 1, TC)  bs_ref: (1, 1, TC)   7x7 (dil 3) depthwise taps / bias
    # o_ref : (H, W, TC)
    # p_ref : VMEM (H+4,  WP1, TC)  stage-1 halo buffer, interior at cols [8, 8+W)
    # q_ref : VMEM (H+18, WP2, TC)  stage-2 halo buffer (f32), interior at cols [16, 16+W)
    H, W, TC = o_ref.shape
    WP1 = p_ref.shape[1]
    WP2 = q_ref.shape[1]
    CX, CZ = 8, 16                      # sublane-aligned interior column offsets

    # Zero only the halo borders; interiors are fully overwritten every step.
    # Done every grid step (not @pl.when(first)): with "parallel" grid axes each
    # TensorCore owns private scratch and may never execute grid index 0.
    p_ref[0:2, :, :] = jnp.zeros((2, WP1, TC), p_ref.dtype)
    p_ref[2 + H:, :, :] = jnp.zeros((2, WP1, TC), p_ref.dtype)
    p_ref[:, 0:CX, :] = jnp.zeros((H + 4, CX, TC), p_ref.dtype)
    p_ref[:, CX + W:, :] = jnp.zeros((H + 4, WP1 - CX - W, TC), p_ref.dtype)
    q_ref[0:9, :, :] = jnp.zeros((9, WP2, TC), jnp.float32)
    q_ref[9 + H:, :, :] = jnp.zeros((9, WP2, TC), jnp.float32)
    q_ref[:, 0:CZ, :] = jnp.zeros((H + 18, CZ, TC), jnp.float32)
    q_ref[:, CZ + W:, :] = jnp.zeros((H + 18, WP2 - CZ - W, TC), jnp.float32)

    # Place the input tile into the padded stage-1 buffer (aligned col offset).
    p_ref[2:2 + H, CX:CX + W, :] = x_ref[...]

    w0 = w0_ref[...].astype(jnp.float32)          # (25, 1, TC)
    b0 = b0_ref[...].astype(jnp.float32)          # (1, 1, TC)
    ws = ws_ref[...].astype(jnp.float32)          # (49, 1, TC)
    bs = bs_ref[...].astype(jnp.float32)          # (1, 1, TC)

    n_strips = H // sh

    # Stage 1: 5x5 depthwise, pad 2.  One band load per (strip, dh); the five
    # kw shifts are register-level slices of that band and the accumulator is
    # strip-sized so it stays in vregs instead of a spilled full-image buffer.
    # TODO(synk): the kw shifts could use pltpu.roll on the sublane axis to
    # trade the slice relayouts for XLU rotates.
    def _stage1(s, carry):
        r0 = pl.multiple_of(s * sh, sh)
        acc = jnp.broadcast_to(b0, (sh, W, TC))
        for dh in range(5):
            band = p_ref[pl.ds(r0 + dh, sh), :, :].astype(jnp.float32)
            for dw in range(5):
                c0 = CX - 2 + dw
                acc = acc + band[:, c0:c0 + W, :] * w0[dh * 5 + dw]
        q_ref[pl.ds(9 + r0, sh), CZ:CZ + W, :] = acc
        return carry

    jax.lax.fori_loop(0, n_strips, _stage1, 0)

    # Stage 2: 7x7 depthwise, dilation 3, pad 9 (fused; the conv0 output never
    # touches HBM).  Same band/strip structure.
    def _stage2(s, carry):
        r0 = pl.multiple_of(s * sh, sh)
        acc = jnp.broadcast_to(bs, (sh, W, TC))
        for kh in range(7):
            band = q_ref[pl.ds(r0 + 3 * kh, sh), :, :]
            for kw in range(7):
                c0 = CZ - 9 + 3 * kw
                acc = acc + band[:, c0:c0 + W, :] * ws[kh * 7 + kw]
        o_ref[pl.ds(r0, sh), :, :] = acc.astype(o_ref.dtype)
        return carry

    jax.lax.fori_loop(0, n_strips, _stage2, 0)


def _pw_out_kernel(attn_ref, u_ref, sc_ref, wc_ref, bc_ref, w2_ref, b2_ref, o_ref):
    # attn/u/sc: (TM, C);  wc/w2: (C, C) in activation dtype;  bc/b2: (1, C) f32
    a = jnp.dot(attn_ref[...], wc_ref[...], preferred_element_type=jnp.float32)
    a = a + bc_ref[...].astype(jnp.float32)                  # conv1 (1x1)
    g = u_ref[...].astype(jnp.float32) * a                   # u * attn gating
    y = jnp.dot(g.astype(attn_ref.dtype), w2_ref[...],
                preferred_element_type=jnp.float32)
    y = y + b2_ref[...].astype(jnp.float32)                  # proj_2 (1x1)
    o_ref[...] = (y + sc_ref[...].astype(jnp.float32)).astype(o_ref.dtype)


# ------------------------------ wrappers ------------------------------------

def _row_tile(m):
    tm = 1024 if _vmem_limit_bytes() >= (72 << 20) else 512
    return min(tm, m)


def _pick_chan_tile(C, H, W, itemsize):
    if C <= 256:
        return C
    cands = [t for t in (256, 128) if C % t == 0]
    if not cands:
        return C
    budget = max(_vmem_limit_bytes() - (8 << 20), 16 << 20)
    wp1 = _round_up(W + 10, 8)
    wp2 = _round_up(W + 25, 8)
    for tc in cands:
        scratch = (H + 4) * wp1 * tc * itemsize + (H + 18) * wp2 * tc * 4
        blocks = 2 * 2 * H * W * tc * itemsize          # in + out, double buffered
        if scratch + blocks <= budget:
            return tc
    return cands[-1]


def _pick_strip_rows(H, wp2, tc, itemsize=4, budget=64 * 1024):
    # Largest strip whose band fits comfortably in the vreg file.
    for sh in (H, 16, 8, 4, 2):
        if sh <= H and H % sh == 0 and sh * wp2 * tc * itemsize <= budget:
            return sh
    return 1


def _pointwise_in(x2d, w_t, b):
    M, C = x2d.shape
    TM = _row_tile(M)
    row = pl.BlockSpec((TM, C), lambda i: (i, 0))
    return pl.pallas_call(
        _pw_in_kernel,
        out_shape=jax.ShapeDtypeStruct((M, C), x2d.dtype),
        grid_spec=pltpu.PrefetchScalarGridSpec(
            num_scalar_prefetch=0,
            grid=(pl.cdiv(M, TM),),
            in_specs=[row,
                      pl.BlockSpec((C, C), lambda i: (0, 0)),
                      pl.BlockSpec((1, C), lambda i: (0, 0))],
            out_specs=row,
        ),
        compiler_params=_compiler_params(1),
    )(x2d, w_t, b)


def _dw_attention(u, w0, b0, ws, bs):
    N, H, W, C = u.shape
    TC = _pick_chan_tile(C, H, W, u.dtype.itemsize)
    WP1 = _round_up(W + 10, 8)
    WP2 = _round_up(W + 25, 8)
    SH = _pick_strip_rows(H, WP2, TC)
    kernel = functools.partial(_dw_attn_kernel, sh=SH)
    img = pl.BlockSpec((None, H, W, TC), lambda n, c: (n, 0, 0, c))
    # TODO(synk): add an H-strip grid axis (overlapping halo via manual DMA) so
    # scratch scales with the strip and both v7x TensorCores stay busy at N=1.
    return pl.pallas_call(
        kernel,
        out_shape=jax.ShapeDtypeStruct((N, H, W, C), u.dtype),
        grid_spec=pltpu.PrefetchScalarGridSpec(
            num_scalar_prefetch=0,
            grid=(N, C // TC),
            in_specs=[
                img,
                pl.BlockSpec((25, 1, TC), lambda n, c: (0, 0, c)),
                pl.BlockSpec((1, 1, TC), lambda n, c: (0, 0, c)),
                pl.BlockSpec((49, 1, TC), lambda n, c: (0, 0, c)),
                pl.BlockSpec((1, 1, TC), lambda n, c: (0, 0, c)),
            ],
            out_specs=img,
            scratch_shapes=[
                pltpu.VMEM((H + 4, WP1, TC), u.dtype),        # 5x5 halo buffer
                pltpu.VMEM((H + 18, WP2, TC), jnp.float32),   # 7x7 (dil 3) halo buffer
            ],
        ),
        compiler_params=_compiler_params(2),
    )(u, w0, b0, ws, bs)


def _pointwise_out(attn2d, u2d, sc2d, wc_t, bc, w2_t, b2):
    M, C = attn2d.shape
    TM = _row_tile(M)
    row = pl.BlockSpec((TM, C), lambda i: (i, 0))
    full_w = pl.BlockSpec((C, C), lambda i: (0, 0))
    full_b = pl.BlockSpec((1, C), lambda i: (0, 0))
    # TODO(synk): single-buffer the constant-index weight specs (pl.Buffered)
    # once broadly supported, to reclaim the duplicate weight buffers on v7x.
    return pl.pallas_call(
        _pw_out_kernel,
        out_shape=jax.ShapeDtypeStruct((M, C), sc2d.dtype),
        grid_spec=pltpu.PrefetchScalarGridSpec(
            num_scalar_prefetch=0,
            grid=(pl.cdiv(M, TM),),
            in_specs=[row, row, row, full_w, full_b, full_w, full_b],
            out_specs=row,
        ),
        input_output_aliases={2: 0},     # shortcut buffer is reused for the output
        compiler_params=_compiler_params(1),
    )(attn2d, u2d, sc2d, wc_t, bc, w2_t, b2)


def spatial_attention_pallas(x_nchw, params):
    """Full SpatialAttention.forward.  x_nchw: (N, C, H, W) PyTorch layout."""
    N, C, H, W = x_nchw.shape
    dt = x_nchw.dtype

    # Single layout change for the whole block (channels -> lane axis).
    x = jnp.transpose(x_nchw, (0, 2, 3, 1))            # (N, H, W, C)
    x2d = x.reshape(N * H * W, C)

    # Cheap weight re-layouts.  The (C, C) matmul weights are kept in the
    # activation dtype so the MXU uses its native path (bf16 for bf16 inputs,
    # exact f32 for the f32 test).
    w1_t = jnp.transpose(params["proj_1_w"][:, :, 0, 0]).astype(dt)
    b1 = params["proj_1_b"].reshape(1, C).astype(jnp.float32)
    w0 = jnp.transpose(params["conv0_w"][:, 0], (1, 2, 0)).reshape(25, 1, C)
    b0 = params["conv0_b"].reshape(1, 1, C)
    ws = jnp.transpose(params["conv_spatial_w"][:, 0], (1, 2, 0)).reshape(49, 1, C)
    bs = params["conv_spatial_b"].reshape(1, 1, C)
    wc_t = jnp.transpose(params["conv1_w"][:, :, 0, 0]).astype(dt)
    bc = params["conv1_b"].reshape(1, C).astype(jnp.float32)
    w2_t = jnp.transpose(params["proj_2_w"][:, :, 0, 0]).astype(dt)
    b2 = params["proj_2_b"].reshape(1, C).astype(jnp.float32)

    u2d = _pointwise_in(x2d, w1_t, b1)                 # gelu(proj_1(x))
    attn = _dw_attention(u2d.reshape(N, H, W, C), w0, b0, ws, bs)
    out2d = _pointwise_out(attn.reshape(N * H * W, C), u2d, x2d,
                           wc_t, bc, w2_t, b2)         # proj_2(u*conv1(attn)) + x
    return jnp.transpose(out2d.reshape(N, H, W, C), (0, 3, 1, 2))


# ------------------------------ reference -----------------------------------

def _reference_forward(x, params):
    C = x.shape[1]
    hp = jax.lax.Precision.HIGHEST

    def conv1x1(h, w, b):
        y = jax.lax.conv_general_dilated(
            h, w, (1, 1), ((0, 0), (0, 0)),
            dimension_numbers=("NCHW", "OIHW", "NCHW"), precision=hp)
        return y + b.reshape(1, -1, 1, 1)

    def dwconv(h, w, b, pad, dil):
        y = jax.lax.conv_general_dilated(
            h, w, (1, 1), ((pad, pad), (pad, pad)), rhs_dilation=(dil, dil),
            dimension_numbers=("NCHW", "OIHW", "NCHW"),
            feature_group_count=C, precision=hp)
        return y + b.reshape(1, -1, 1, 1)

    shortcut = x
    h = conv1x1(x, params["proj_1_w"], params["proj_1_b"])
    h = jax.nn.gelu(h, approximate=False)
    u = h
    attn = dwconv(h, params["conv0_w"], params["conv0_b"], 2, 1)
    attn = dwconv(attn, params["conv_spatial_w"], params["conv_spatial_b"], 9, 3)
    attn = conv1x1(attn, params["conv1_w"], params["conv1_b"])
    h = u * attn
    h = conv1x1(h, params["proj_2_w"], params["proj_2_b"])
    return h + shortcut


# -------------------------------- main ---------------------------------------

if __name__ == "__main__":
    key = jax.random.PRNGKey(0)
    N, C, H, W = 2, 4, 16, 16      # small test shapes; real VAN uses d_model up to 768
    keys = jax.random.split(key, 11)

    def uinit(k, shape, fan_in):
        bound = 1.0 / math.sqrt(fan_in)
        return jax.random.uniform(k, shape, minval=-bound, maxval=bound,
                                  dtype=jnp.float32)

    params = {
        "proj_1_w": uinit(keys[0], (C, C, 1, 1), C),
        "proj_1_b": uinit(keys[1], (C,), C),
        "conv0_w": uinit(keys[2], (C, 1, 5, 5), 25),
        "conv0_b": uinit(keys[3], (C,), 25),
        "conv_spatial_w": uinit(keys[4], (C, 1, 7, 7), 49),
        "conv_spatial_b": uinit(keys[5], (C,), 49),
        "conv1_w": uinit(keys[6], (C, C, 1, 1), C),
        "conv1_b": uinit(keys[7], (C,), C),
        "proj_2_w": uinit(keys[8], (C, C, 1, 1), C),
        "proj_2_b": uinit(keys[9], (C,), C),
    }
    x = jax.random.normal(keys[10], (N, C, H, W), dtype=jnp.float32)

    out = jax.block_until_ready(spatial_attention_pallas(x, params))
    ref = jax.block_until_ready(_reference_forward(x, params))

    assert out.shape == (N, C, H, W)
    max_err = float(jnp.max(jnp.abs(out - ref)))
    assert jnp.allclose(out, ref, atol=2e-3, rtol=2e-3), max_err

    print("KERNEL_OK")
</pallas_src>

<mosaic_0001>
module attributes {stable_mosaic.version = 11 : i64} {
  func.func @_pw_in_kernel(%arg0: i32, %arg1: memref<512x4xf32, #tpu.memory_space<vmem>>, %arg2: memref<4x4xf32, #tpu.memory_space<vmem>>, %arg3: memref<1x4xf32, #tpu.memory_space<vmem>>, %arg4: memref<512x4xf32, #tpu.memory_space<vmem>>) attributes {dimension_semantics = [#tpu.dimension_semantics<parallel>], iteration_bounds = array<i64: 1>, scalar_prefetch = 0 : i64, scratch_operands = 0 : i64, tpu.core_type = #tpu.core_type<tc>, window_params = [{transform_indices = @transform_0, window_bounds = array<i64: 512, 4>}, {pipeline_mode = #tpu.pipeline_mode<synchronous>, transform_indices = @transform_1, window_bounds = array<i64: 4, 4>}, {pipeline_mode = #tpu.pipeline_mode<synchronous>, transform_indices = @transform_2, window_bounds = array<i64: 1, 4>}, {transform_indices = @transform_3, window_bounds = array<i64: 512, 4>}]} {
    %c0 = arith.constant 0 : index
    %c0_0 = arith.constant 0 : index
    %0 = vector.load %arg1[%c0, %c0_0] : memref<512x4xf32, #tpu.memory_space<vmem>>, vector<512x4xf32>
    %c0_1 = arith.constant 0 : index
    %c0_2 = arith.constant 0 : index
    %1 = vector.load %arg2[%c0_1, %c0_2] : memref<4x4xf32, #tpu.memory_space<vmem>>, vector<4x4xf32>
    %cst = arith.constant dense<0.000000e+00> : vector<512x4xf32>
    %2 = tpu.matmul %0, %1, %cst {dimension_numbers = #tpu.dot_dimension_numbers<[1], [0], [0], [1], [0, 0, 1, 1], [], []>} : vector<512x4xf32>, vector<4x4xf32>, vector<512x4xf32> -> vector<512x4xf32>
    %c0_3 = arith.constant 0 : index
    %c0_4 = arith.constant 0 : index
    %3 = vector.load %arg3[%c0_3, %c0_4] : memref<1x4xf32, #tpu.memory_space<vmem>>, vector<1x4xf32>
    %4 = vector.broadcast %3 : vector<1x4xf32> to vector<512x4xf32>
    %5 = arith.addf %2, %4 : vector<512x4xf32>
    %cst_5 = arith.constant 5.000000e-01 : f32
    %6 = vector.broadcast %cst_5 : f32 to vector<512x4xf32>
    %7 = arith.mulf %6, %5 : vector<512x4xf32>
    %cst_6 = arith.constant 0.707106769 : f32
    %8 = vector.broadcast %cst_6 : f32 to vector<512x4xf32>
    %9 = arith.mulf %5, %8 : vector<512x4xf32>
    %cst_7 = arith.constant 0.000000e+00 : f32
    %10 = vector.broadcast %cst_7 : f32 to vector<512x4xf32>
    %11 = arith.cmpf oge, %9, %10 : vector<512x4xf32>
    %cst_8 = arith.constant 1.000000e+00 : f32
    %cst_9 = arith.constant -1.000000e+00 : f32
    %12 = vector.broadcast %cst_8 : f32 to vector<512x4xf32>
    %13 = vector.broadcast %cst_9 : f32 to vector<512x4xf32>
    %14 = arith.select %11, %12, %13 : vector<512x4xi1>, vector<512x4xf32>
    %15 = math.absf %9 : vector<512x4xf32>
    %cst_10 = arith.constant 0.327591091 : f32
    %16 = vector.broadcast %cst_10 : f32 to vector<512x4xf32>
    %17 = arith.mulf %16, %15 : vector<512x4xf32>
    %cst_11 = arith.constant 1.000000e+00 : f32
    %18 = vector.broadcast %cst_11 : f32 to vector<512x4xf32>
    %19 = arith.addf %18, %17 : vector<512x4xf32>
    %20 = tpu.reciprocal %19 {approx = true} : vector<512x4xf32> -> vector<512x4xf32>
    %21 = arith.mulf %19, %20 : vector<512x4xf32>
    %cst_12 = arith.constant 2.000000e+00 : f32
    %22 = vector.broadcast %cst_12 : f32 to vector<512x4xf32>
    %23 = arith.subf %22, %21 : vector<512x4xf32>
    %24 = arith.mulf %20, %23 : vector<512x4xf32>
    %cst_13 = arith.constant 1.06140542 : f32
    %25 = vector.broadcast %cst_13 : f32 to vector<512x4xf32>
    %26 = arith.mulf %25, %24 : vector<512x4xf32>
    %cst_14 = arith.constant -1.45315206 : f32
    %27 = vector.broadcast %cst_14 : f32 to vector<512x4xf32>
    %28 = arith.addf %26, %27 : vector<512x4xf32>
    %29 = arith.mulf %28, %24 : vector<512x4xf32>
    %cst_15 = arith.constant 1.42141378 : f32
    %30 = vector.broadcast %cst_15 : f32 to vector<512x4xf32>
    %31 = arith.addf %29, %30 : vector<512x4xf32>
    %32 = arith.mulf %31, %24 : vector<512x4xf32>
    %cst_16 = arith.constant -0.284496725 : f32
    %33 = vector.broadcast %cst_16 : f32 to vector<512x4xf32>
    %34 = arith.addf %32, %33 : vector<512x4xf32>
    %35 = arith.mulf %34, %24 : vector<512x4xf32>
    %cst_17 = arith.constant 0.254829586 : f32
    %36 = vector.broadcast %cst_17 : f32 to vector<512x4xf32>
    %37 = arith.addf %35, %36 : vector<512x4xf32>
    %38 = arith.mulf %37, %24 : vector<512x4xf32>
    %cst_18 = arith.constant 0.000000e+00 : f32
    %39 = vector.broadcast %cst_18 : f32 to vector<512x4xf32>
    %40 = arith.subf %39, %15 : vector<512x4xf32>
    %41 = arith.mulf %40, %15 : vector<512x4xf32>
    %42 = math.exp %41 : vector<512x4xf32>
    %43 = arith.mulf %38, %42 : vector<512x4xf32>
    %cst_19 = arith.constant 1.000000e+00 : f32
    %44 = vector.broadcast %cst_19 : f32 to vector<512x4xf32>
    %45 = arith.subf %44, %43 : vector<512x4xf32>
    %46 = arith.mulf %14, %45 : vector<512x4xf32>
    %cst_20 = arith.constant 1.000000e+00 : f32
    %47 = vector.broadcast %cst_20 : f32 to vector<512x4xf32>
    %48 = arith.addf %47, %46 : vector<512x4xf32>
    %49 = arith.mulf %7, %48 : vector<512x4xf32>
    %c0_21 = arith.constant 0 : index
    %c0_22 = arith.constant 0 : index
    %50 = vector.load %arg4[%c0_21, %c0_22] : memref<512x4xf32, #tpu.memory_space<vmem>>, vector<512x4xf32>
    tpu.vector_store %arg4[%c0_21, %c0_22], %49 {strides = array<i32>} : memref<512x4xf32, #tpu.memory_space<vmem>>, vector<512x4xf32>,
    return
  }
  func.func @transform_0(%arg0: i32) -> (i32, i32) {
    %c0_i32 = arith.constant 0 : i32
    %c0_i32_0 = arith.constant 0 : i32
    return %arg0, %c0_i32 : i32, i32
  }
  func.func @transform_1(%arg0: i32) -> (i32, i32) {
    %c0_i32 = arith.constant 0 : i32
    %c0_i32_0 = arith.constant 0 : i32
    %c0_i32_1 = arith.constant 0 : i32
    return %c0_i32, %c0_i32_0 : i32, i32
  }
  func.func @transform_2(%arg0: i32) -> (i32, i32) {
    %c0_i32 = arith.constant 0 : i32
    %c0_i32_0 = arith.constant 0 : i32
    %c0_i32_1 = arith.constant 0 : i32
    return %c0_i32, %c0_i32_0 : i32, i32
  }
  func.func @transform_3(%arg0: i32) -> (i32, i32) {
    %c0_i32 = arith.constant 0 : i32
    %c0_i32_0 = arith.constant 0 : i32
    return %arg0, %c0_i32 : i32, i32
  }
}

</mosaic_0001>

<llo_original>
// kernel: tpu_custom_call.1
$region0: #{tpu_custom_call.1}
  #allocation0 [shape = 'u32[]', space=smem, size = 0x4, offset = 0x4, fixed_abs, tag = 'smem constant byte address 0x4 - core index']
  #allocation1 [shape = 'u32[144,128]{1,0:T(1,128)}', space=vmem, size = 0x12000, scoped, tag = 'internal scratch']
  %s0 = inlined_call_operand.vmem [shape: f32[512,4], index: 0, kind: input, shape index: {}]
  %s1 = inlined_call_operand.vmem [shape: f32[4,4], index: 1, kind: input, shape index: {}]
  %s2 = inlined_call_operand.vmem [shape: f32[1,4], index: 2, kind: input, shape index: {}]
  %s3 = inlined_call_operand.vmem [shape: f32[512,4], index: 3, kind: output, shape index: {}]
  %s4 = sld [smem:[#allocation0]]
  $region22: #{tpu_custom_call.1} parent=0
    _
  %s6 = ssub.s32 1, %s4
  %s7 = scalar_select 0, %s6, %s4
  // Predicated region
  $region2: #{tpu_custom_call.1} parent=0 // pred_check
    _
  $region3: #{tpu_custom_call.1} parent=0 // pred_check_branch
    %9 = sbr.rel (0) target = $region5
  $region4: #{tpu_custom_call.1} parent=0 // pred_region
    _
  $region5: #{tpu_custom_call.1} parent=0 // pred_fallthru
    _
  // Predicated region
  $region6: #{tpu_custom_call.1} parent=0 // pred_check
    _
  $region7: #{tpu_custom_call.1} parent=0 // pred_check_branch
    %11 = sbr.rel (0) target = $region9
  $region8: #{tpu_custom_call.1} parent=0 // pred_region
    _
  $region9: #{tpu_custom_call.1} parent=0 // pred_fallthru
    _
  // Predicated region
  $region10: #{tpu_custom_call.1} parent=0 // pred_check
    _
  $region11: #{tpu_custom_call.1} parent=0 // pred_check_branch
    %13 = sbr.rel (0) target = $region13
  $region12: #{tpu_custom_call.1} parent=0 // pred_region
    _
  $region13: #{tpu_custom_call.1} parent=0 // pred_fallthru
    _
  %v14 = vld [vmem:[%s0] sm:$0xff]
  %v15 = vld [vmem:[%s0 + $0x8] sm:$0xff]
  %v16 = vld [vmem:[%s0 + $0x10] sm:$0xff]
  %v17 = vld [vmem:[%s0 + $0x18] sm:$0xff]
  %v18 = vld [vmem:[%s0 + $0x20] sm:$0xff]
  %v19 = vld [vmem:[%s0 + $0x28] sm:$0xff]
  %v20 = vld [vmem:[%s0 + $0x30] sm:$0xff]
  %v21 = vld [vmem:[%s0 + $0x38] sm:$0xff]
  %v22 = vld [vmem:[%s0 + $0x40] sm:$0xff]
  %v23 = vld [vmem:[%s0 + $0x48] sm:$0xff]
  %v24 = vld [vmem:[%s0 + $0x50] sm:$0xff]
  %v25 = vld [vmem:[%s0 + $0x58] sm:$0xff]
  %v26 = vld [vmem:[%s0 + $0x60] sm:$0xff]
  %v27 = vld [vmem:[%s0 + $0x68] sm:$0xff]
  %v28 = vld [vmem:[%s0 + $0x70] sm:$0xff]
  %v29 = vld [vmem:[%s0 + $0x78] sm:$0xff]
  %v30 = vld [vmem:[%s0 + $0x80] sm:$0xff]
  %v31 = vld [vmem:[%s0 + $0x88] sm:$0xff]
  %v32 = vld [vmem:[%s0 + $0x90] sm:$0xff]
  %v33 = vld [vmem:[%s0 + $0x98] sm:$0xff]
  %v34 = vld [vmem:[%s0 + $0xa0] sm:$0xff]
  %v35 = vld [vmem:[%s0 + $0xa8] sm:$0xff]
  %v36 = vld [vmem:[%s0 + $0xb0] sm:$0xff]
  %v37 = vld [vmem:[%s0 + $0xb8] sm:$0xff]
  %v38 = vld [vmem:[%s0 + $0xc0] sm:$0xff]
  %v39 = vld [vmem:[%s0 + $0xc8] sm:$0xff]
  %v40 = vld [vmem:[%s0 + $0xd0] sm:$0xff]
  %v41 = vld [vmem:[%s0 + $0xd8] sm:$0xff]
  %v42 = vld [vmem:[%s0 + $0xe0] sm:$0xff]
  %v43 = vld [vmem:[%s0 + $0xe8] sm:$0xff]
  %v44 = vld [vmem:[%s0 + $0xf0] sm:$0xff]
  %v45 = vld [vmem:[%s0 + $0xf8] sm:$0xff]
  %v46 = vld [vmem:[%s0 + $0x100] sm:$0xff]
  %v47 = vld [vmem:[%s0 + $0x108] sm:$0xff]
  %v48 = vld [vmem:[%s0 + $0x110] sm:$0xff]
  %v49 = vld [vmem:[%s0 + $0x118] sm:$0xff]
  %v50 = vld [vmem:[%s0 + $0x120] sm:$0xff]
  %v51 = vld [vmem:[%s0 + $0x128] sm:$0xff]
  %v52 = vld [vmem:[%s0 + $0x130] sm:$0xff]
  %v53 = vld [vmem:[%s0 + $0x138] sm:$0xff]
  %v54 = vld [vmem:[%s0 + $0x140] sm:$0xff]
  %v55 = vld [vmem:[%s0 + $0x148] sm:$0xff]
  %v56 = vld [vmem:[%s0 + $0x150] sm:$0xff]
  %v57 = vld [vmem:[%s0 + $0x158] sm:$0xff]
  %v58 = vld [vmem:[%s0 + $0x160] sm:$0xff]
  %v59 = vld [vmem:[%s0 + $0x168] sm:$0xff]
  %v60 = vld [vmem:[%s0 + $0x170] sm:$0xff]
  %v61 = vld [vmem:[%s0 + $0x178] sm:$0xff]
  %v62 = vld [vmem:[%s0 + $0x180] sm:$0xff]
  %v63 = vld [vmem:[%s0 + $0x188] sm:$0xff]
  %v64 = vld [vmem:[%s0 + $0x190] sm:$0xff]
  %v65 = vld [vmem:[%s0 + $0x198] sm:$0xff]
  %v66 = vld [vmem:[%s0 + $0x1a0] sm:$0xff]
  %v67 = vld [vmem:[%s0 + $0x1a8] sm:$0xff]
  %v68 = vld [vmem:[%s0 + $0x1b0] sm:$0xff]
  %v69 = vld [vmem:[%s0 + $0x1b8] sm:$0xff]
  %v70 = vld [vmem:[%s0 + $0x1c0] sm:$0xff]
  %v71 = vld [vmem:[%s0 + $0x1c8] sm:$0xff]
  %v72 = vld [vmem:[%s0 + $0x1d0] sm:$0xff]
  %v73 = vld [vmem:[%s0 + $0x1d8] sm:$0xff]
  %v74 = vld [vmem:[%s0 + $0x1e0] sm:$0xff]
  %v75 = vld [vmem:[%s0 + $0x1e8] sm:$0xff]
  %v76 = vld [vmem:[%s0 + $0x1f0] sm:$0xff]
  %v77 = vld [vmem:[%s0 + $0x1f8] sm:$0xff]
  %v78 = vld [vmem:[%s1] sm:$0xf]
  %v79 = vld [vmem:[%s2] sm:$0x1]
  %v81 = vlaneseq
  %v82 = vshrl.u32 %v81, 7
  %v83 = vsub.s32 0, %v82
  %v84 = vrot.slane %v79, %v83
  %vm86 = vcmask 31744
  %v88 = vsel %vm86, %v14, 0
  %v91 = vsel %vm86, %v15, 0
  %v94 = vsel %vm86, %v16, 0
  %v97 = vsel %vm86, %v17, 0
  %v100 = vsel %vm86, %v18, 0
  %v103 = vsel %vm86, %v19, 0
  %v106 = vsel %vm86, %v20, 0
  %v109 = vsel %vm86, %v21, 0
  %v112 = vsel %vm86, %v22, 0
  %v115 = vsel %vm86, %v23, 0
  %v118 = vsel %vm86, %v24, 0
  %v121 = vsel %vm86, %v25, 0
  %v124 = vsel %vm86, %v26, 0
  %v127 = vsel %vm86, %v27, 0
  %v130 = vsel %vm86, %v28, 0
  %v133 = vsel %vm86, %v29, 0
  %v136 = vsel %vm86, %v30, 0
  %v139 = vsel %vm86, %v31, 0
  %v142 = vsel %vm86, %v32, 0
  %v145 = vsel %vm86, %v33, 0
  %v148 = vsel %vm86, %v34, 0
  %v151 = vsel %vm86, %v35, 0
  %v154 = vsel %vm86, %v36, 0
  %v157 = vsel %vm86, %v37, 0
  %v160 = vsel %vm86, %v38, 0
  %v163 = vsel %vm86, %v39, 0
  %v166 = vsel %vm86, %v40, 0
  %v169 = vsel %vm86, %v41, 0
  %v172 = vsel %vm86, %v42, 0
  %v175 = vsel %vm86, %v43, 0
  %v178 = vsel %vm86, %v44, 0
  %v181 = vsel %vm86, %v45, 0
  %v184 = vsel %vm86, %v46, 0
  %v187 = vsel %vm86, %v47, 0
  %v190 = vsel %vm86, %v48, 0
  %v193 = vsel %vm86, %v49, 0
  %v196 = vsel %vm86, %v50, 0
  %v199 = vsel %vm86, %v51, 0
  %v202 = vsel %vm86, %v52, 0
  %v205 = vsel %vm86, %v53, 0
  %v208 = vsel %vm86, %v54, 0
  %v211 = vsel %vm86, %v55, 0
  %v214 = vsel %vm86, %v56, 0
  %v217 = vsel %vm86, %v57, 0
  %v220 = vsel %vm86, %v58, 0
  %v223 = vsel %vm86, %v59, 0
  %v226 = vsel %vm86, %v60, 0
  %v229 = vsel %vm86, %v61, 0
  %v232 = vsel %vm86, %v62, 0
  %v235 = vsel %vm86, %v63, 0
  %v238 = vsel %vm86, %v64, 0
  %v241 = vsel %vm86, %v65, 0
  %v244 = vsel %vm86, %v66, 0
  %v247 = vsel %vm86, %v67, 0
  %v250 = vsel %vm86, %v68, 0
  %v253 = vsel %vm86, %v69, 0
  %v256 = vsel %vm86, %v70, 0
  %v259 = vsel %vm86, %v71, 0
  %v262 = vsel %vm86, %v72, 0
  %v265 = vsel %vm86, %v73, 0
  %v268 = vsel %vm86, %v74, 0
  %v271 = vsel %vm86, %v75, 0
  %v274 = vsel %vm86, %v76, 0
  %v277 = vsel %vm86, %v77, 0
  %vm279 = vcmask 1043456
  %v281 = vsel %vm279, %v78, 0
  %283 = vmatprep.subr.mxu0 0.0
  %284 = vmatpush1.msra.mxu0 %v281
  %285 = vmatprep.subr.mxu0 0.0
  %286 = vmatpush1.msra.mxu0 0.0
  %287 = vmatprep.subr.mxu0 0.0
  %288 = vmatpush1.msra.mxu0 0.0
  %289 = vmatprep.subr.mxu0 0.0
  %290 = vmatpush1.msra.mxu0 0.0
  %291 = vmatprep.subr.mxu0 0.0
  %292 = vmatpush1.msra.mxu0 0.0
  %293 = vmatprep.subr.mxu0 0.0
  %294 = vmatpush1.msra.mxu0 0.0
  %295 = vmatprep.subr.mxu0 0.0
  %296 = vmatpush1.msra.mxu0 0.0
  %297 = vmatprep.subr.mxu0 0.0
  %298 = vmatpush1.msra.mxu0 0.0
  %299 = vmatprep.subr.mxu0 0.0
  %300 = vmatpush1.msra.mxu0 0.0
  %301 = vmatprep.subr.mxu0 0.0
  %302 = vmatpush1.msra.mxu0 0.0
  %303 = vmatprep.subr.mxu0 0.0
  %304 = vmatpush1.msra.mxu0 0.0
  %305 = vmatprep.subr.mxu0 0.0
  %306 = vmatpush1.msra.mxu0 0.0
  %307 = vmatprep.subr.mxu0 0.0
  %308 = vmatpush1.msra.mxu0 0.0
  %309 = vmatprep.subr.mxu0 0.0
  %310 = vmatpush1.msra.mxu0 0.0
  %311 = vmatprep.subr.mxu0 0.0
  %312 = vmatpush1.msra.mxu0 0.0
  %313 = vmatprep.subr.mxu0 0.0
  %314 = vmatpush1.msra.mxu0 0.0
  %315 = vmatprep.subr.mxu0 0.0
  %316 = vmatpush1.msra.mxu0 0.0
  %317 = vmatprep.subr.mxu0 0.0
  %318 = vmatpush1.msra.mxu0 0.0
  %319 = vmatprep.subr.mxu0 0.0
  %320 = vmatpush1.msra.mxu0 0.0
  %321 = vmatprep.subr.mxu0 0.0
  %322 = vmatpush1.msra.mxu0 0.0
  %323 = vmatprep.subr.mxu0 0.0
  %324 = vmatpush1.msra.mxu0 0.0
  %325 = vmatprep.subr.mxu0 0.0
  %326 = vmatpush1.msra.mxu0 0.0
  %327 = vmatprep.subr.mxu0 0.0
  %328 = vmatpush1.msra.mxu0 0.0
  %329 = vmatprep.subr.mxu0 0.0
  %330 = vmatpush1.msra.mxu0 0.0
  %331 = vmatprep.subr.mxu0 0.0
  %332 = vmatpush1.msra.mxu0 0.0
  %333 = vmatprep.subr.mxu0 0.0
  %334 = vmatpush1.msra.mxu0 0.0
  %335 = vmatprep.subr.mxu0 0.0
  %336 = vmatpush1.msra.mxu0 0.0
  %337 = vmatprep.subr.mxu0 0.0
  %338 = vmatpush1.msra.mxu0 0.0
  %339 = vmatprep.subr.mxu0 0.0
  %340 = vmatpush1.msra.mxu0 0.0
  %341 = vmatprep.subr.mxu0 0.0
  %342 = vmatpush1.msra.mxu0 0.0
  %343 = vmatprep.subr.mxu0 0.0
  %344 = vmatpush1.msra.mxu0 0.0
  %345 = vmatprep.subr.mxu0 0.0
  %346 = vmatpush1.msra.mxu0 0.0
  %347 = vmatprep.mubr.f32.mxu0 0.0
  %348 = vmatmul.mubr.f32.gmra.mrb[0].mxu0 %v88
  %v349 = vpop.f32.mrb[0].mxu0
  %v350 = vadd.f32 %v84, %v349
  %v351 = vpop.f32.mrb[0].mxu0
  %352 = vmatprep.mubr.f32.mxu0 0.0
  %353 = vmatmul.mubr.f32.gmra.mrb[0].mxu0 %v91
  %v354 = vpop.f32.mrb[0].mxu0
  %v355 = vadd.f32 %v84, %v354
  %v356 = vpop.f32.mrb[0].mxu0
  %357 = vmatprep.mubr.f32.mxu0 0.0
  %358 = vmatmul.mubr.f32.gmra.mrb[0].mxu0 %v94
  %v359 = vpop.f32.mrb[0].mxu0
  %v360 = vadd.f32 %v84, %v359
  %v361 = vpop.f32.mrb[0].mxu0
  %362 = vmatprep.mubr.f32.mxu0 0.0
  %363 = vmatmul.mubr.f32.gmra.mrb[0].mxu0 %v97
  %v364 = vpop.f32.mrb[0].mxu0
  %v365 = vadd.f32 %v84, %v364
  %v366 = vpop.f32.mrb[0].mxu0
  %367 = vmatprep.mubr.f32.mxu0 0.0
  %368 = vmatmul.mubr.f32.gmra.mrb[0].mxu0 %v100
  %v369 = vpop.f32.mrb[0].mxu0
  %v370 = vadd.f32 %v84, %v369
  %v371 = vpop.f32.mrb[0].mxu0
  %372 = vmatprep.mubr.f32.mxu0 0.0
  %373 = vmatmul.mubr.f32.gmra.mrb[0].mxu0 %v103
  %v374 = vpop.f32.mrb[0].mxu0
  %v375 = vadd.f32 %v84, %v374
  %v376 = vpop.f32.mrb[0].mxu0
  %377 = vmatprep.mubr.f32.mxu0 0.0
  %378 = vmatmul.mubr.f32.gmra.mrb[0].mxu0 %v106
  %v379 = vpop.f32.mrb[0].mxu0
  %v380 = vadd.f32 %v84, %v379
  %v381 = vpop.f32.mrb[0].mxu0
  %382 = vmatprep.mubr.f32.mxu0 0.0
  %383 = vmatmul.mubr.f32.gmra.mrb[0].mxu0 %v109
  %v384 = vpop.f32.mrb[0].mxu0
  %v385 = vadd.f32 %v84, %v384
  %v386 = vpop.f32.mrb[0].mxu0
  %387 = vmatprep.mubr.f32.mxu0 0.0
  %388 = vmatmul.mubr.f32.gmra.mrb[0].mxu0 %v112
  %v389 = vpop.f32.mrb[0].mxu0
  %v390 = vadd.f32 %v84, %v389
  %v391 = vpop.f32.mrb[0].mxu0
  %392 = vmatprep.mubr.f32.mxu0 0.0
  %393 = vmatmul.mubr.f32.gmra.mrb[0].mxu0 %v115
  %v394 = vpop.f32.mrb[0].mxu0
  %v395 = vadd.f32 %v84, %v394
  %v396 = vpop.f32.mrb[0].mxu0
  %397 = vmatprep.mubr.f32.mxu0 0.0
  %398 = vmatmul.mubr.f32.gmra.mrb[0].mxu0 %v118
  %v399 = vpop.f32.mrb[0].mxu0
  %v400 = vadd.f32 %v84, %v399
  %v401 = vpop.f32.mrb[0].mxu0
  %402 = vmatprep.mubr.f32.mxu0 0.0
  %403 = vmatmul.mubr.f32.gmra.mrb[0].mxu0 %v121
  %v404 = vpop.f32.mrb[0].mxu0
  %v405 = vadd.f32 %v84, %v404
  %v406 = vpop.f32.mrb[0].mxu0
  %407 = vmatprep.mubr.f32.mxu0 0.0
  %408 = vmatmul.mubr.f32.gmra.mrb[0].mxu0 %v124
  %v409 = vpop.f32.mrb[0].mxu0
  %v410 = vadd.f32 %v84, %v409
  %v411 = vpop.f32.mrb[0].mxu0
  %412 = vmatprep.mubr.f32.mxu0 0.0
  %413 = vmatmul.mubr.f32.gmra.mrb[0].mxu0 %v127
  %v414 = vpop.f32.mrb[0].mxu0
  %v415 = vadd.f32 %v84, %v414
  %v416 = vpop.f32.mrb[0].mxu0
  %417 = vmatprep.mubr.f32.mxu0 0.0
  %418 = vmatmul.mubr.f32.gmra.mrb[0].mxu0 %v130
  %v419 = vpop.f32.mrb[0].mxu0
  %v420 = vadd.f32 %v84, %v419
  %v421 = vpop.f32.mrb[0].mxu0
  %422 = vmatprep.mubr.f32.mxu0 0.0
  %423 = vmatmul.mubr.f32.gmra.mrb[0].mxu0 %v133
  %v424 = vpop.f32.mrb[0].mxu0
  %v425 = vadd.f32 %v84, %v424
  %v426 = vpop.f32.mrb[0].mxu0
  %427 = vmatprep.mubr.f32.mxu0 0.0
  %428 = vmatmul.mubr.f32.gmra.mrb[0].mxu0 %v136
  %v429 = vpop.f32.mrb[0].mxu0
  %v430 = vadd.f32 %v84, %v429
  %v431 = vpop.f32.mrb[0].mxu0
  %432 = vmatprep.mubr.f32.mxu0 0.0
  %433 = vmatmul.mubr.f32.gmra.mrb[0].mxu0 %v139
  %v434 = vpop.f32.mrb[0].mxu0
  %v435 = vadd.f32 %v84, %v434
  %v436 = vpop.f32.mrb[0].mxu0
  %437 = vmatprep.mubr.f32.mxu0 0.0
  %438 = vmatmul.mubr.f32.gmra.mrb[0].mxu0 %v142
  %v439 = vpop.f32.mrb[0].mxu0
  %v440 = vadd.f32 %v84, %v439
  %v441 = vpop.f32.mrb[0].mxu0
  %442 = vmatprep.mubr.f32.mxu0 0.0
  %443 = vmatmul.mubr.f32.gmra.mrb[0].mxu0 %v145
  %v444 = vpop.f32.mrb[0].mxu0
  %v445 = vadd.f32 %v84, %v444
  %v446 = vpop.f32.mrb[0].mxu0
  %447 = vmatprep.mubr.f32.mxu0 0.0
  %448 = vmatmul.mubr.f32.gmra.mrb[0].mxu0 %v148
  %v449 = vpop.f32.mrb[0].mxu0
  %v450 = vadd.f32 %v84, %v449
  %v451 = vpop.f32.mrb[0].mxu0
  %452 = vmatprep.mubr.f32.mxu0 0.0
  %453 = vmatmul.mubr.f32.gmra.mrb[0].mxu0 %v151
  %v454 = vpop.f32.mrb[0].mxu0
  %v455 = vadd.f32 %v84, %v454
  %v456 = vpop.f32.mrb[0].mxu0
  %457 = vmatprep.mubr.f32.mxu0 0.0
  %458 = vmatmul.mubr.f32.gmra.mrb[0].mxu0 %v154
  %v459 = vpop.f32.mrb[0].mxu0
  %v460 = vadd.f32 %v84, %v459
  %v461 = vpop.f32.mrb[0].mxu0
  %462 = vmatprep.mubr.f32.mxu0 0.0
  %463 = vmatmul.mubr.f32.gmra.mrb[0].mxu0 %v157
  %v464 = vpop.f32.mrb[0].mxu0
  %v465 = vadd.f32 %v84, %v464
  %v466 = vpop.f32.mrb[0].mxu0
  %467 = vmatprep.mubr.f32.mxu0 0.0
  %468 = vmatmul.mubr.f32.gmra.mrb[0].mxu0 %v160
  %v469 = vpop.f32.mrb[0].mxu0
  %v470 = vadd.f32 %v84, %v469
  %v471 = vpop.f32.mrb[0].mxu0
  %472 = vmatprep.mubr.f32.mxu0 0.0
  %473 = vmatmul.mubr.f32.gmra.mrb[0].mxu0 %v163
  %v474 = vpop.f32.mrb[0].mxu0
  %v475 = vadd.f32 %v84, %v474
  %v476 = vpop.f32.mrb[0].mxu0
  %477 = vmatprep.mubr.f32.mxu0 0.0
  %478 = vmatmul.mubr.f32.gmra.mrb[0].mxu0 %v166
  %v479 = vpop.f32.mrb[0].mxu0
  %v480 = vadd.f32 %v84, %v479
  %v481 = vpop.f32.mrb[0].mxu0
  %482 = vmatprep.mubr.f32.mxu0 0.0
  %483 = vmatmul.mubr.f32.gmra.mrb[0].mxu0 %v169
  %v484 = vpop.f32.mrb[0].mxu0
  %v485 = vadd.f32 %v84, %v484
  %v486 = vpop.f32.mrb[0].mxu0
  %487 = vmatprep.mubr.f32.mxu0 0.0
  %488 = vmatmul.mubr.f32.gmra.mrb[0].mxu0 %v172
  %v489 = vpop.f32.mrb[0].mxu0
  %v490 = vadd.f32 %v84, %v489
  %v491 = vpop.f32.mrb[0].mxu0
  %492 = vmatprep.mubr.f32.mxu0 0.0
  %493 = vmatmul.mubr.f32.gmra.mrb[0].mxu0 %v175
  %v494 = vpop.f32.mrb[0].mxu0
  %v495 = vadd.f32 %v84, %v494
  %v496 = vpop.f32.mrb[0].mxu0
  %497 = vmatprep.mubr.f32.mxu0 0.0
  %498 = vmatmul.mubr.f32.gmra.mrb[0].mxu0 %v178
  %v499 = vpop.f32.mrb[0].mxu0
  %v500 = vadd.f32 %v84, %v499
  %v501 = vpop.f32.mrb[0].mxu0
  %502 = vmatprep.mubr.f32.mxu0 0.0
  %503 = vmatmul.mubr.f32.gmra.mrb[0].mxu0 %v181
  %v504 = vpop.f32.mrb[0].mxu0
  %v505 = vadd.f32 %v84, %v504
  %v506 = vpop.f32.mrb[0].mxu0
  %507 = vmatprep.mubr.f32.mxu0 0.0
  %508 = vmatmul.mubr.f32.gmra.mrb[0].mxu0 %v184
  %v509 = vpop.f32.mrb[0].mxu0
  %v510 = vadd.f32 %v84, %v509
  %v511 = vpop.f32.mrb[0].mxu0
  %512 = vmatprep.mubr.f32.mxu0 0.0
  %513 = vmatmul.mubr.f32.gmra.mrb[0].mxu0 %v187
  %v514 = vpop.f32.mrb[0].mxu0
  %v515 = vadd.f32 %v84, %v514
  %v516 = vpop.f32.mrb[0].mxu0
  %517 = vmatprep.mubr.f32.mxu0 0.0
  %518 = vmatmul.mubr.f32.gmra.mrb[0].mxu0 %v190
  %v519 = vpop.f32.mrb[0].mxu0
  %v520 = vadd.f32 %v84, %v519
  %v521 = vpop.f32.mrb[0].mxu0
  %522 = vmatprep.mubr.f32.mxu0 0.0
  %523 = vmatmul.mubr.f32.gmra.mrb[0].mxu0 %v193
  %v524 = vpop.f32.mrb[0].mxu0
  %v525 = vadd.f32 %v84, %v524
  %v526 = vpop.f32.mrb[0].mxu0
  %527 = vmatprep.mubr.f32.mxu0 0.0
  %528 = vmatmul.mubr.f32.gmra.mrb[0].mxu0 %v196
  %v529 = vpop.f32.mrb[0].mxu0
  %v530 = vadd.f32 %v84, %v529
  %v531 = vpop.f32.mrb[0].mxu0
  %532 = vmatprep.mubr.f32.mxu0 0.0
  %533 = vmatmul.mubr.f32.gmra.mrb[0].mxu0 %v199
  %v534 = vpop.f32.mrb[0].mxu0
  %v535 = vadd.f32 %v84, %v534
  %v536 = vpop.f32.mrb[0].mxu0
  %537 = vmatprep.mubr.f32.mxu0 0.0
  %538 = vmatmul.mubr.f32.gmra.mrb[0].mxu0 %v202
  %v539 = vpop.f32.mrb[0].mxu0
  %v540 = vadd.f32 %v84, %v539
  %v541 = vpop.f32.mrb[0].mxu0
  %542 = vmatprep.mubr.f32.mxu0 0.0
  %543 = vmatmul.mubr.f32.gmra.mrb[0].mxu0 %v205
  %v544 = vpop.f32.mrb[0].mxu0
  %v545 = vadd.f32 %v84, %v544
  %v546 = vpop.f32.mrb[0].mxu0
  %547 = vmatprep.mubr.f32.mxu0 0.0
  %548 = vmatmul.mubr.f32.gmra.mrb[0].mxu0 %v208
  %v549 = vpop.f32.mrb[0].mxu0
  %v550 = vadd.f32 %v84, %v549
  %v551 = vpop.f32.mrb[0].mxu0
  %552 = vmatprep.mubr.f32.mxu0 0.0
  %553 = vmatmul.mubr.f32.gmra.mrb[0].mxu0 %v211
  %v554 = vpop.f32.mrb[0].mxu0
  %v555 = vadd.f32 %v84, %v554
  %v556 = vpop.f32.mrb[0].mxu0
  %557 = vmatprep.mubr.f32.mxu0 0.0
  %558 = vmatmul.mubr.f32.gmra.mrb[0].mxu0 %v214
  %v559 = vpop.f32.mrb[0].mxu0
  %v560 = vadd.f32 %v84, %v559
  %v561 = vpop.f32.mrb[0].mxu0
  %562 = vmatprep.mubr.f32.mxu0 0.0
  %563 = vmatmul.mubr.f32.gmra.mrb[0].mxu0 %v217
  %v564 = vpop.f32.mrb[0].mxu0
  %v565 = vadd.f32 %v84, %v564
  %v566 = vpop.f32.mrb[0].mxu0
  %567 = vmatprep.mubr.f32.mxu0 0.0
  %568 = vmatmul.mubr.f32.gmra.mrb[0].mxu0 %v220
  %v569 = vpop.f32.mrb[0].mxu0
  %v570 = vadd.f32 %v84, %v569
  %v571 = vpop.f32.mrb[0].mxu0
  %572 = vmatprep.mubr.f32.mxu0 0.0
  %573 = vmatmul.mubr.f32.gmra.mrb[0].mxu0 %v223
  %v574 = vpop.f32.mrb[0].mxu0
  %v575 = vadd.f32 %v84, %v574
  %v576 = vpop.f32.mrb[0].mxu0
  %577 = vmatprep.mubr.f32.mxu0 0.0
  %578 = vmatmul.mubr.f32.gmra.mrb[0].mxu0 %v226
  %v579 = vpop.f32.mrb[0].mxu0
  %v580 = vadd.f32 %v84, %v579
  %v581 = vpop.f32.mrb[0].mxu0
  %582 = vmatprep.mubr.f32.mxu0 0.0
  %583 = vmatmul.mubr.f32.gmra.mrb[0].mxu0 %v229
  %v584 = vpop.f32.mrb[0].mxu0
  %v585 = vadd.f32 %v84, %v584
  %v586 = vpop.f32.mrb[0].mxu0
  %587 = vmatprep.mubr.f32.mxu0 0.0
  %588 = vmatmul.mubr.f32.gmra.mrb[0].mxu0 %v232
  %v589 = vpop.f32.mrb[0].mxu0
  %v590 = vadd.f32 %v84, %v589
  %v591 = vpop.f32.mrb[0].mxu0
  %592 = vmatprep.mubr.f32.mxu0 0.0
  %593 = vmatmul.mubr.f32.gmra.mrb[0].mxu0 %v235
  %v594 = vpop.f32.mrb[0].mxu0
  %v595 = vadd.f32 %v84, %v594
  %v596 = vpop.f32.mrb[0].mxu0
  %597 = vmatprep.mubr.f32.mxu0 0.0
  %598 = vmatmul.mubr.f32.gmra.mrb[0].mxu0 %v238
  %v599 = vpop.f32.mrb[0].mxu0
  %v600 = vadd.f32 %v84, %v599
  %v601 = vpop.f32.mrb[0].mxu0
  %602 = vmatprep.mubr.f32.mxu0 0.0
  %603 = vmatmul.mubr.f32.gmra.mrb[0].mxu0 %v241
  %v604 = vpop.f32.mrb[0].mxu0
  %v605 = vadd.f32 %v84, %v604
  %v606 = vpop.f32.mrb[0].mxu0
  %607 = vmatprep.mubr.f32.mxu0 0.0
  %608 = vmatmul.mubr.f32.gmra.mrb[0].mxu0 %v244
  %v609 = vpop.f32.mrb[0].mxu0
  %v610 = vadd.f32 %v84, %v609
  %v611 = vpop.f32.mrb[0].mxu0
  %612 = vmatprep.mubr.f32.mxu0 0.0
  %613 = vmatmul.mubr.f32.gmra.mrb[0].mxu0 %v247
  %v614 = vpop.f32.mrb[0].mxu0
  %v615 = vadd.f32 %v84, %v614
  %v616 = vpop.f32.mrb[0].mxu0
  %617 = vmatprep.mubr.f32.mxu0 0.0
  %618 = vmatmul.mubr.f32.gmra.mrb[0].mxu0 %v250
  %v619 = vpop.f32.mrb[0].mxu0
  %v620 = vadd.f32 %v84, %v619
  %v621 = vpop.f32.mrb[0].mxu0
  %622 = vmatprep.mubr.f32.mxu0 0.0
  %623 = vmatmul.mubr.f32.gmra.mrb[0].mxu0 %v253
  %v624 = vpop.f32.mrb[0].mxu0
  %v625 = vadd.f32 %v84, %v624
  %v626 = vpop.f32.mrb[0].mxu0
  %627 = vmatprep.mubr.f32.mxu0 0.0
  %628 = vmatmul.mubr.f32.gmra.mrb[0].mxu0 %v256
  %v629 = vpop.f32.mrb[0].mxu0
  %v630 = vadd.f32 %v84, %v629
  %v631 = vpop.f32.mrb[0].mxu0
  %632 = vmatprep.mubr.f32.mxu0 0.0
  %633 = vmatmul.mubr.f32.gmra.mrb[0].mxu0 %v259
  %v634 = vpop.f32.mrb[0].mxu0
  %v635 = vadd.f32 %v84, %v634
  %v636 = vpop.f32.mrb[0].mxu0
  %637 = vmatprep.mubr.f32.mxu0 0.0
  %638 = vmatmul.mubr.f32.gmra.mrb[0].mxu0 %v262
  %v639 = vpop.f32.mrb[0].mxu0
  %v640 = vadd.f32 %v84, %v639
  %v641 = vpop.f32.mrb[0].mxu0
  %642 = vmatprep.mubr.f32.mxu0 0.0
  %643 = vmatmul.mubr.f32.gmra.mrb[0].mxu0 %v265
  %v644 = vpop.f32.mrb[0].mxu0
  %v645 = vadd.f32 %v84, %v644
  %v646 = vpop.f32.mrb[0].mxu0
  %647 = vmatprep.mubr.f32.mxu0 0.0
  %648 = vmatmul.mubr.f32.gmra.mrb[0].mxu0 %v268
  %v649 = vpop.f32.mrb[0].mxu0
  %v650 = vadd.f32 %v84, %v649
  %v651 = vpop.f32.mrb[0].mxu0
  %652 = vmatprep.mubr.f32.mxu0 0.0
  %653 = vmatmul.mubr.f32.gmra.mrb[0].mxu0 %v271
  %v654 = vpop.f32.mrb[0].mxu0
  %v655 = vadd.f32 %v84, %v654
  %v656 = vpop.f32.mrb[0].mxu0
  %657 = vmatprep.mubr.f32.mxu0 0.0
  %658 = vmatmul.mubr.f32.gmra.mrb[0].mxu0 %v274
  %v659 = vpop.f32.mrb[0].mxu0
  %v660 = vadd.f32 %v84, %v659
  %v661 = vpop.f32.mrb[0].mxu0
  %662 = vmatprep.mubr.f32.mxu0 0.0
  %663 = vmatmul.mubr.f32.gmra.mrb[0].mxu0 %v277
  %v664 = vpop.f32.mrb[0].mxu0
  %v665 = vadd.f32 %v84, %v664
  %v666 = vpop.f32.mrb[0].mxu0
  %667 = vdwg.mxu0
  %v668 = vmul.f32 %v350, 0.5
  %v669 = vmul.f32 %v355, 0.5
  %v670 = vmul.f32 %v360, 0.5
  %v671 = vmul.f32 %v365, 0.5
  %v672 = vmul.f32 %v370, 0.5
  %v673 = vmul.f32 %v375, 0.5
  %v674 = vmul.f32 %v380, 0.5
  %v675 = vmul.f32 %v385, 0.5
  %v676 = vmul.f32 %v390, 0.5
  %v677 = vmul.f32 %v395, 0.5
  %v678 = vmul.f32 %v400, 0.5
  %v679 = vmul.f32 %v405, 0.5
  %v680 = vmul.f32 %v410, 0.5
  %v681 = vmul.f32 %v415, 0.5
  %v682 = vmul.f32 %v420, 0.5
  %v683 = vmul.f32 %v425, 0.5
  %v684 = vmul.f32 %v430, 0.5
  %v685 = vmul.f32 %v435, 0.5
  %v686 = vmul.f32 %v440, 0.5
  %v687 = vmul.f32 %v445, 0.5
  %v688 = vmul.f32 %v450, 0.5
  %v689 = vmul.f32 %v455, 0.5
  %v690 = vmul.f32 %v460, 0.5
  %v691 = vmul.f32 %v465, 0.5
  %v692 = vmul.f32 %v470, 0.5
  %v693 = vmul.f32 %v475, 0.5
  %v694 = vmul.f32 %v480, 0.5
  %v695 = vmul.f32 %v485, 0.5
  %v696 = vmul.f32 %v490, 0.5
  %v697 = vmul.f32 %v495, 0.5
  %v698 = vmul.f32 %v500, 0.5
  %v699 = vmul.f32 %v505, 0.5
  %v700 = vmul.f32 %v510, 0.5
  %v701 = vmul.f32 %v515, 0.5
  %v702 = vmul.f32 %v520, 0.5
  %v703 = vmul.f32 %v525, 0.5
  %v704 = vmul.f32 %v530, 0.5
  %v705 = vmul.f32 %v535, 0.5
  %v706 = vmul.f32 %v540, 0.5
  %v707 = vmul.f32 %v545, 0.5
  %v708 = vmul.f32 %v550, 0.5
  %v709 = vmul.f32 %v555, 0.5
  %v710 = vmul.f32 %v560, 0.5
  %v711 = vmul.f32 %v565, 0.5
  %v712 = vmul.f32 %v570, 0.5
  %v713 = vmul.f32 %v575, 0.5
  %v714 = vmul.f32 %v580, 0.5
  %v715 = vmul.f32 %v585, 0.5
  %v716 = vmul.f32 %v590, 0.5
  %v717 = vmul.f32 %v595, 0.5
  %v718 = vmul.f32 %v600, 0.5
  %v719 = vmul.f32 %v605, 0.5
  %v720 = vmul.f32 %v610, 0.5
  %v721 = vmul.f32 %v615, 0.5
  %v722 = vmul.f32 %v620, 0.5
  %v723 = vmul.f32 %v625, 0.5
  %v724 = vmul.f32 %v630, 0.5
  %v725 = vmul.f32 %v635, 0.5
  %v726 = vmul.f32 %v640, 0.5
  %v727 = vmul.f32 %v645, 0.5
  %v728 = vmul.f32 %v650, 0.5
  %v729 = vmul.f32 %v655, 0.5
  %v730 = vmul.f32 %v660, 0.5
  %v731 = vmul.f32 %v665, 0.5
  %v732 = vmul.f32 %v350, 0.70710677
  %v733 = vmul.f32 %v355, 0.70710677
  %v734 = vmul.f32 %v360, 0.70710677
  %v735 = vmul.f32 %v365, 0.70710677
  %v736 = vmul.f32 %v370, 0.70710677
  %v737 = vmul.f32 %v375, 0.70710677
  %v738 = vmul.f32 %v380, 0.70710677
  %v739 = vmul.f32 %v385, 0.70710677
  %v740 = vmul.f32 %v390, 0.70710677
  %v741 = vmul.f32 %v395, 0.70710677
  %v742 = vmul.f32 %v400, 0.70710677
  %v743 = vmul.f32 %v405, 0.70710677
  %v744 = vmul.f32 %v410, 0.70710677
  %v745 = vmul.f32 %v415, 0.70710677
  %v746 = vmul.f32 %v420, 0.70710677
  %v747 = vmul.f32 %v425, 0.70710677
  %v748 = vmul.f32 %v430, 0.70710677
  %v749 = vmul.f32 %v435, 0.70710677
  %v750 = vmul.f32 %v440, 0.70710677
  %v751 = vmul.f32 %v445, 0.70710677
  %v752 = vmul.f32 %v450, 0.70710677
  %v753 = vmul.f32 %v455, 0.70710677
  %v754 = vmul.f32 %v460, 0.70710677
  %v755 = vmul.f32 %v465, 0.70710677
  %v756 = vmul.f32 %v470, 0.70710677
  %v757 = vmul.f32 %v475, 0.70710677
  %v758 = vmul.f32 %v480, 0.70710677
  %v759 = vmul.f32 %v485, 0.70710677
  %v760 = vmul.f32 %v490, 0.70710677
  %v761 = vmul.f32 %v495, 0.70710677
  %v762 = vmul.f32 %v500, 0.70710677
  %v763 = vmul.f32 %v505, 0.70710677
  %v764 = vmul.f32 %v510, 0.70710677
  %v765 = vmul.f32 %v515, 0.70710677
  %v766 = vmul.f32 %v520, 0.70710677
  %v767 = vmul.f32 %v525, 0.70710677
  %v768 = vmul.f32 %v530, 0.70710677
  %v769 = vmul.f32 %v535, 0.70710677
  %v770 = vmul.f32 %v540, 0.70710677
  %v771 = vmul.f32 %v545, 0.70710677
  %v772 = vmul.f32 %v550, 0.70710677
  %v773 = vmul.f32 %v555, 0.70710677
  %v774 = vmul.f32 %v560, 0.70710677
  %v775 = vmul.f32 %v565, 0.70710677
  %v776 = vmul.f32 %v570, 0.70710677
  %v777 = vmul.f32 %v575, 0.70710677
  %v778 = vmul.f32 %v580, 0.70710677
  %v779 = vmul.f32 %v585, 0.70710677
  %v780 = vmul.f32 %v590, 0.70710677
  %v781 = vmul.f32 %v595, 0.70710677
  %v782 = vmul.f32 %v600, 0.70710677
  %v783 = vmul.f32 %v605, 0.70710677
  %v784 = vmul.f32 %v610, 0.70710677
  %v785 = vmul.f32 %v615, 0.70710677
  %v786 = vmul.f32 %v620, 0.70710677
  %v787 = vmul.f32 %v625, 0.70710677
  %v788 = vmul.f32 %v630, 0.70710677
  %v789 = vmul.f32 %v635, 0.70710677
  %v790 = vmul.f32 %v640, 0.70710677
  %v791 = vmul.f32 %v645, 0.70710677
  %v792 = vmul.f32 %v650, 0.70710677
  %v793 = vmul.f32 %v655, 0.70710677
  %v794 = vmul.f32 %v660, 0.70710677
  %v795 = vmul.f32 %v665, 0.70710677
  %vm796 = vcmp.ge.f32.partialorder %v732, 0.0
  %vm797 = vcmp.ge.f32.partialorder %v733, 0.0
  %vm798 = vcmp.ge.f32.partialorder %v734, 0.0
  %vm799 = vcmp.ge.f32.partialorder %v735, 0.0
  %vm800 = vcmp.ge.f32.partialorder %v736, 0.0
  %vm801 = vcmp.ge.f32.partialorder %v737, 0.0
  %vm802 = vcmp.ge.f32.partialorder %v738, 0.0
  %vm803 = vcmp.ge.f32.partialorder %v739, 0.0
  %vm804 = vcmp.ge.f32.partialorder %v740, 0.0
  %vm805 = vcmp.ge.f32.partialorder %v741, 0.0
  %vm806 = vcmp.ge.f32.partialorder %v742, 0.0
  %vm807 = vcmp.ge.f32.partialorder %v743, 0.0
  %vm808 = vcmp.ge.f32.partialorder %v744, 0.0
  %vm809 = vcmp.ge.f32.partialorder %v745, 0.0
  %vm810 = vcmp.ge.f32.partialorder %v746, 0.0
  %vm811 = vcmp.ge.f32.partialorder %v747, 0.0
  %vm812 = vcmp.ge.f32.partialorder %v748, 0.0
  %vm813 = vcmp.ge.f32.partialorder %v749, 0.0
  %vm814 = vcmp.ge.f32.partialorder %v750, 0.0
  %vm815 = vcmp.ge.f32.partialorder %v751, 0.0
  %vm816 = vcmp.ge.f32.partialorder %v752, 0.0
  %vm817 = vcmp.ge.f32.partialorder %v753, 0.0
  %vm818 = vcmp.ge.f32.partialorder %v754, 0.0
  %vm819 = vcmp.ge.f32.partialorder %v755, 0.0
  %vm820 = vcmp.ge.f32.partialorder %v756, 0.0
  %vm821 = vcmp.ge.f32.partialorder %v757, 0.0
  %vm822 = vcmp.ge.f32.partialorder %v758, 0.0
  %vm823 = vcmp.ge.f32.partialorder %v759, 0.0
  %vm824 = vcmp.ge.f32.partialorder %v760, 0.0
  %vm825 = vcmp.ge.f32.partialorder %v761, 0.0
  %vm826 = vcmp.ge.f32.partialorder %v762, 0.0
  %vm827 = vcmp.ge.f32.partialorder %v763, 0.0
  %vm828 = vcmp.ge.f32.partialorder %v764, 0.0
  %vm829 = vcmp.ge.f32.partialorder %v765, 0.0
  %vm830 = vcmp.ge.f32.partialorder %v766, 0.0
  %vm831 = vcmp.ge.f32.partialorder %v767, 0.0
  %vm832 = vcmp.ge.f32.partialorder %v768, 0.0
  %vm833 = vcmp.ge.f32.partialorder %v769, 0.0
  %vm834 = vcmp.ge.f32.partialorder %v770, 0.0
  %vm835 = vcmp.ge.f32.partialorder %v771, 0.0
  %vm836 = vcmp.ge.f32.partialorder %v772, 0.0
  %vm837 = vcmp.ge.f32.partialorder %v773, 0.0
  %vm838 = vcmp.ge.f32.partialorder %v774, 0.0
  %vm839 = vcmp.ge.f32.partialorder %v775, 0.0
  %vm840 = vcmp.ge.f32.partialorder %v776, 0.0
  %vm841 = vcmp.ge.f32.partialorder %v777, 0.0
  %vm842 = vcmp.ge.f32.partialorder %v778, 0.0
  %vm843 = vcmp.ge.f32.partialorder %v779, 0.0
  %vm844 = vcmp.ge.f32.partialorder %v780, 0.0
  %vm845 = vcmp.ge.f32.partialorder %v781, 0.0
  %vm846 = vcmp.ge.f32.partialorder %v782, 0.0
  %vm847 = vcmp.ge.f32.partialorder %v783, 0.0
  %vm848 = vcmp.ge.f32.partialorder %v784, 0.0
  %vm849 = vcmp.ge.f32.partialorder %v785, 0.0
  %vm850 = vcmp.ge.f32.partialorder %v786, 0.0
  %vm851 = vcmp.ge.f32.partialorder %v787, 0.0
  %vm852 = vcmp.ge.f32.partialorder %v788, 0.0
  %vm853 = vcmp.ge.f32.partialorder %v789, 0.0
  %vm854 = vcmp.ge.f32.partialorder %v790, 0.0
  %vm855 = vcmp.ge.f32.partialorder %v791, 0.0
  %vm856 = vcmp.ge.f32.partialorder %v792, 0.0
  %vm857 = vcmp.ge.f32.partialorder %v793, 0.0
  %vm858 = vcmp.ge.f32.partialorder %v794, 0.0
  %vm859 = vcmp.ge.f32.partialorder %v795, 0.0
  %v860 = vsel %vm796, 1.0, -1.0
  %v861 = vsel %vm797, 1.0, -1.0
  %v862 = vsel %vm798, 1.0, -1.0
  %v863 = vsel %vm799, 1.0, -1.0
  %v864 = vsel %vm800, 1.0, -1.0
  %v865 = vsel %vm801, 1.0, -1.0
  %v866 = vsel %vm802, 1.0, -1.0
  %v867 = vsel %vm803, 1.0, -1.0
  %v868 = vsel %vm804, 1.0, -1.0
  %v869 = vsel %vm805, 1.0, -1.0
  %v870 = vsel %vm806, 1.0, -1.0
  %v871 = vsel %vm807, 1.0, -1.0
  %v872 = vsel %vm808, 1.0, -1.0
  %v873 = vsel %vm809, 1.0, -1.0
  %v874 = vsel %vm810, 1.0, -1.0
  %v875 = vsel %vm811, 1.0, -1.0
  %v876 = vsel %vm812, 1.0, -1.0
  %v877 = vsel %vm813, 1.0, -1.0
  %v878 = vsel %vm814, 1.0, -1.0
  %v879 = vsel %vm815, 1.0, -1.0
  %v880 = vsel %vm816, 1.0, -1.0
  %v881 = vsel %vm817, 1.0, -1.0
  %v882 = vsel %vm818, 1.0, -1.0
  %v883 = vsel %vm819, 1.0, -1.0
  %v884 = vsel %vm820, 1.0, -1.0
  %v885 = vsel %vm821, 1.0, -1.0
  %v886 = vsel %vm822, 1.0, -1.0
  %v887 = vsel %vm823, 1.0, -1.0
  %v888 = vsel %vm824, 1.0, -1.0
  %v889 = vsel %vm825, 1.0, -1.0
  %v890 = vsel %vm826, 1.0, -1.0
  %v891 = vsel %vm827, 1.0, -1.0
  %v892 = vsel %vm828, 1.0, -1.0
  %v893 = vsel %vm829, 1.0, -1.0
  %v894 = vsel %vm830, 1.0, -1.0
  %v895 = vsel %vm831, 1.0, -1.0
  %v896 = vsel %vm832, 1.0, -1.0
  %v897 = vsel %vm833, 1.0, -1.0
  %v898 = vsel %vm834, 1.0, -1.0
  %v899 = vsel %vm835, 1.0, -1.0
  %v900 = vsel %vm836, 1.0, -1.0
  %v901 = vsel %vm837, 1.0, -1.0
  %v902 = vsel %vm838, 1.0, -1.0
  %v903 = vsel %vm839, 1.0, -1.0
  %v904 = vsel %vm840, 1.0, -1.0
  %v905 = vsel %vm841, 1.0, -1.0
  %v906 = vsel %vm842, 1.0, -1.0
  %v907 = vsel %vm843, 1.0, -1.0
  %v908 = vsel %vm844, 1.0, -1.0
  %v909 = vsel %vm845, 1.0, -1.0
  %v910 = vsel %vm846, 1.0, -1.0
  %v911 = vsel %vm847, 1.0, -1.0
  %v912 = vsel %vm848, 1.0, -1.0
  %v913 = vsel %vm849, 1.0, -1.0
  %v914 = vsel %vm850, 1.0, -1.0
  %v915 = vsel %vm851, 1.0, -1.0
  %v916 = vsel %vm852, 1.0, -1.0
  %v917 = vsel %vm853, 1.0, -1.0
  %v918 = vsel %vm854, 1.0, -1.0
  %v919 = vsel %vm855, 1.0, -1.0
  %v920 = vsel %vm856, 1.0, -1.0
  %v921 = vsel %vm857, 1.0, -1.0
  %v922 = vsel %vm858, 1.0, -1.0
  %v923 = vsel %vm859, 1.0, -1.0
  %v924 = vand.u32 2147483647, %v732
  %v925 = vand.u32 2147483647, %v733
  %v926 = vand.u32 2147483647, %v734
  %v927 = vand.u32 2147483647, %v735
  %v928 = vand.u32 2147483647, %v736
  %v929 = vand.u32 2147483647, %v737
  %v930 = vand.u32 2147483647, %v738
  %v931 = vand.u32 2147483647, %v739
  %v932 = vand.u32 2147483647, %v740
  %v933 = vand.u32 2147483647, %v741
  %v934 = vand.u32 2147483647, %v742
  %v935 = vand.u32 2147483647, %v743
  %v936 = vand.u32 2147483647, %v744
  %v937 = vand.u32 2147483647, %v745
  %v938 = vand.u32 2147483647, %v746
  %v939 = vand.u32 2147483647, %v747
  %v940 = vand.u32 2147483647, %v748
  %v941 = vand.u32 2147483647, %v749
  %v942 = vand.u32 2147483647, %v750
  %v943 = vand.u32 2147483647, %v751
  %v944 = vand.u32 2147483647, %v752
  %v945 = vand.u32 2147483647, %v753
  %v946 = vand.u32 2147483647, %v754
  %v947 = vand.u32 2147483647, %v755
  %v948 = vand.u32 2147483647, %v756
  %v949 = vand.u32 2147483647, %v757
  %v950 = vand.u32 2147483647, %v758
  %v951 = vand.u32 2147483647, %v759
  %v952 = vand.u32 2147483647, %v760
  %v953 = vand.u32 2147483647, %v761
  %v954 = vand.u32 2147483647, %v762
  %v955 = vand.u32 2147483647, %v763
  %v956 = vand.u32 2147483647, %v764
  %v957 = vand.u32 2147483647, %v765
  %v958 = vand.u32 2147483647, %v766
  %v959 = vand.u32 2147483647, %v767
  %v960 = vand.u32 2147483647, %v768
  %v961 = vand.u32 2147483647, %v769
  %v962 = vand.u32 2147483647, %v770
  %v963 = vand.u32 2147483647, %v771
  %v964 = vand.u32 2147483647, %v772
  %v965 = vand.u32 2147483647, %v773
  %v966 = vand.u32 2147483647, %v774
  %v967 = vand.u32 2147483647, %v775
  %v968 = vand.u32 2147483647, %v776
  %v969 = vand.u32 2147483647, %v777
  %v970 = vand.u32 2147483647, %v778
  %v971 = vand.u32 2147483647, %v779
  %v972 = vand.u32 2147483647, %v780
  %v973 = vand.u32 2147483647, %v781
  %v974 = vand.u32 2147483647, %v782
  %v975 = vand.u32 2147483647, %v783
  %v976 = vand.u32 2147483647, %v784
  %v977 = vand.u32 2147483647, %v785
  %v978 = vand.u32 2147483647, %v786
  %v979 = vand.u32 2147483647, %v787
  %v980 = vand.u32 2147483647, %v788
  %v981 = vand.u32 2147483647, %v789
  %v982 = vand.u32 2147483647, %v790
  %v983 = vand.u32 2147483647, %v791
  %v984 = vand.u32 2147483647, %v792
  %v985 = vand.u32 2147483647, %v793
  %v986 = vand.u32 2147483647, %v794
  %v987 = vand.u32 2147483647, %v795
  %v988 = vmul.f32 %v924, 0.3275911
  %v989 = vmul.f32 %v925, 0.3275911
  %v990 = vmul.f32 %v926, 0.3275911
  %v991 = vmul.f32 %v927, 0.3275911
  %v992 = vmul.f32 %v928, 0.3275911
  %v993 = vmul.f32 %v929, 0.3275911
  %v994 = vmul.f32 %v930, 0.3275911
  %v995 = vmul.f32 %v931, 0.3275911
  %v996 = vmul.f32 %v932, 0.3275911
  %v997 = vmul.f32 %v933, 0.3275911
  %v998 = vmul.f32 %v934, 0.3275911
  %v999 = vmul.f32 %v935, 0.3275911
  %v1000 = vmul.f32 %v936, 0.3275911
  %v1001 = vmul.f32 %v937, 0.3275911
  %v1002 = vmul.f32 %v938, 0.3275911
  %v1003 = vmul.f32 %v939, 0.3275911
  %v1004 = vmul.f32 %v940, 0.3275911
  %v1005 = vmul.f32 %v941, 0.3275911
  %v1006 = vmul.f32 %v942, 0.3275911
  %v1007 = vmul.f32 %v943, 0.3275911
  %v1008 = vmul.f32 %v944, 0.3275911
  %v1009 = vmul.f32 %v945, 0.3275911
  %v1010 = vmul.f32 %v946, 0.3275911
  %v1011 = vmul.f32 %v947, 0.3275911
  %v1012 = vmul.f32 %v948, 0.3275911
  %v1013 = vmul.f32 %v949, 0.3275911
  %v1014 = vmul.f32 %v950, 0.3275911
  %v1015 = vmul.f32 %v951, 0.3275911
  %v1016 = vmul.f32 %v952, 0.3275911
  %v1017 = vmul.f32 %v953, 0.3275911
  %v1018 = vmul.f32 %v954, 0.3275911
  %v1019 = vmul.f32 %v955, 0.3275911
  %v1020 = vmul.f32 %v956, 0.3275911
  %v1021 = vmul.f32 %v957, 0.3275911
  %v1022 = vmul.f32 %v958, 0.3275911
  %v1023 = vmul.f32 %v959, 0.3275911
  %v1024 = vmul.f32 %v960, 0.3275911
  %v1025 = vmul.f32 %v961, 0.3275911
  %v1026 = vmul.f32 %v962, 0.3275911
  %v1027 = vmul.f32 %v963, 0.3275911
  %v1028 = vmul.f32 %v964, 0.3275911
  %v1029 = vmul.f32 %v965, 0.3275911
  %v1030 = vmul.f32 %v966, 0.3275911
  %v1031 = vmul.f32 %v967, 0.3275911
  %v1032 = vmul.f32 %v968, 0.3275911
  %v1033 = vmul.f32 %v969, 0.3275911
  %v1034 = vmul.f32 %v970, 0.3275911
  %v1035 = vmul.f32 %v971, 0.3275911
  %v1036 = vmul.f32 %v972, 0.3275911
  %v1037 = vmul.f32 %v973, 0.3275911
  %v1038 = vmul.f32 %v974, 0.3275911
  %v1039 = vmul.f32 %v975, 0.3275911
  %v1040 = vmul.f32 %v976, 0.3275911
  %v1041 = vmul.f32 %v977, 0.3275911
  %v1042 = vmul.f32 %v978, 0.3275911
  %v1043 = vmul.f32 %v979, 0.3275911
  %v1044 = vmul.f32 %v980, 0.3275911
  %v1045 = vmul.f32 %v981, 0.3275911
  %v1046 = vmul.f32 %v982, 0.3275911
  %v1047 = vmul.f32 %v983, 0.3275911
  %v1048 = vmul.f32 %v984, 0.3275911
  %v1049 = vmul.f32 %v985, 0.3275911
  %v1050 = vmul.f32 %v986, 0.3275911
  %v1051 = vmul.f32 %v987, 0.3275911
  %v1052 = vadd.f32 %v988, 1.0
  %v1053 = vadd.f32 %v989, 1.0
  %v1054 = vadd.f32 %v990, 1.0
  %v1055 = vadd.f32 %v991, 1.0
  %v1056 = vadd.f32 %v992, 1.0
  %v1057 = vadd.f32 %v993, 1.0
  %v1058 = vadd.f32 %v994, 1.0
  %v1059 = vadd.f32 %v995, 1.0
  %v1060 = vadd.f32 %v996, 1.0
  %v1061 = vadd.f32 %v997, 1.0
  %v1062 = vadd.f32 %v998, 1.0
  %v1063 = vadd.f32 %v999, 1.0
  %v1064 = vadd.f32 %v1000, 1.0
  %v1065 = vadd.f32 %v1001, 1.0
  %v1066 = vadd.f32 %v1002, 1.0
  %v1067 = vadd.f32 %v1003, 1.0
  %v1068 = vadd.f32 %v1004, 1.0
  %v1069 = vadd.f32 %v1005, 1.0
  %v1070 = vadd.f32 %v1006, 1.0
  %v1071 = vadd.f32 %v1007, 1.0
  %v1072 = vadd.f32 %v1008, 1.0
  %v1073 = vadd.f32 %v1009, 1.0
  %v1074 = vadd.f32 %v1010, 1.0
  %v1075 = vadd.f32 %v1011, 1.0
  %v1076 = vadd.f32 %v1012, 1.0
  %v1077 = vadd.f32 %v1013, 1.0
  %v1078 = vadd.f32 %v1014, 1.0
  %v1079 = vadd.f32 %v1015, 1.0
  %v1080 = vadd.f32 %v1016, 1.0
  %v1081 = vadd.f32 %v1017, 1.0
  %v1082 = vadd.f32 %v1018, 1.0
  %v1083 = vadd.f32 %v1019, 1.0
  %v1084 = vadd.f32 %v1020, 1.0
  %v1085 = vadd.f32 %v1021, 1.0
  %v1086 = vadd.f32 %v1022, 1.0
  %v1087 = vadd.f32 %v1023, 1.0
  %v1088 = vadd.f32 %v1024, 1.0
  %v1089 = vadd.f32 %v1025, 1.0
  %v1090 = vadd.f32 %v1026, 1.0
  %v1091 = vadd.f32 %v1027, 1.0
  %v1092 = vadd.f32 %v1028, 1.0
  %v1093 = vadd.f32 %v1029, 1.0
  %v1094 = vadd.f32 %v1030, 1.0
  %v1095 = vadd.f32 %v1031, 1.0
  %v1096 = vadd.f32 %v1032, 1.0
  %v1097 = vadd.f32 %v1033, 1.0
  %v1098 = vadd.f32 %v1034, 1.0
  %v1099 = vadd.f32 %v1035, 1.0
  %v1100 = vadd.f32 %v1036, 1.0
  %v1101 = vadd.f32 %v1037, 1.0
  %v1102 = vadd.f32 %v1038, 1.0
  %v1103 = vadd.f32 %v1039, 1.0
  %v1104 = vadd.f32 %v1040, 1.0
  %v1105 = vadd.f32 %v1041, 1.0
  %v1106 = vadd.f32 %v1042, 1.0
  %v1107 = vadd.f32 %v1043, 1.0
  %v1108 = vadd.f32 %v1044, 1.0
  %v1109 = vadd.f32 %v1045, 1.0
  %v1110 = vadd.f32 %v1046, 1.0
  %v1111 = vadd.f32 %v1047, 1.0
  %v1112 = vadd.f32 %v1048, 1.0
  %v1113 = vadd.f32 %v1049, 1.0
  %v1114 = vadd.f32 %v1050, 1.0
  %v1115 = vadd.f32 %v1051, 1.0
  %v1116 = vrcp.pop %v1052
  %v1117 = vrcp.pop %v1053
  %v1118 = vrcp.pop %v1054
  %v1119 = vrcp.pop %v1055
  %v1120 = vrcp.pop %v1056
  %v1121 = vrcp.pop %v1057
  %v1122 = vrcp.pop %v1058
  %v1123 = vrcp.pop %v1059
  %v1124 = vrcp.pop %v1060
  %v1125 = vrcp.pop %v1061
  %v1126 = vrcp.pop %v1062
  %v1127 = vrcp.pop %v1063
  %v1128 = vrcp.pop %v1064
  %v1129 = vrcp.pop %v1065
  %v1130 = vrcp.pop %v1066
  %v1131 = vrcp.pop %v1067
  %v1132 = vrcp.pop %v1068
  %v1133 = vrcp.pop %v1069
  %v1134 = vrcp.pop %v1070
  %v1135 = vrcp.pop %v1071
  %v1136 = vrcp.pop %v1072
  %v1137 = vrcp.pop %v1073
  %v1138 = vrcp.pop %v1074
  %v1139 = vrcp.pop %v1075
  %v1140 = vrcp.pop %v1076
  %v1141 = vrcp.pop %v1077
  %v1142 = vrcp.pop %v1078
  %v1143 = vrcp.pop %v1079
  %v1144 = vrcp.pop %v1080
  %v1145 = vrcp.pop %v1081
  %v1146 = vrcp.pop %v1082
  %v1147 = vrcp.pop %v1083
  %v1148 = vrcp.pop %v1084
  %v1149 = vrcp.pop %v1085
  %v1150 = vrcp.pop %v1086
  %v1151 = vrcp.pop %v1087
  %v1152 = vrcp.pop %v1088
  %v1153 = vrcp.pop %v1089
  %v1154 = vrcp.pop %v1090
  %v1155 = vrcp.pop %v1091
  %v1156 = vrcp.pop %v1092
  %v1157 = vrcp.pop %v1093
  %v1158 = vrcp.pop %v1094
  %v1159 = vrcp.pop %v1095
  %v1160 = vrcp.pop %v1096
  %v1161 = vrcp.pop %v1097
  %v1162 = vrcp.pop %v1098
  %v1163 = vrcp.pop %v1099
  %v1164 = vrcp.pop %v1100
  %v1165 = vrcp.pop %v1101
  %v1166 = vrcp.pop %v1102
  %v1167 = vrcp.pop %v1103
  %v1168 = vrcp.pop %v1104
  %v1169 = vrcp.pop %v1105
  %v1170 = vrcp.pop %v1106
  %v1171 = vrcp.pop %v1107
  %v1172 = vrcp.pop %v1108
  %v1173 = vrcp.pop %v1109
  %v1174 = vrcp.pop %v1110
  %v1175 = vrcp.pop %v1111
  %v1176 = vrcp.pop %v1112
  %v1177 = vrcp.pop %v1113
  %v1178 = vrcp.pop %v1114
  %v1179 = vrcp.pop %v1115
  %v1180 = vmul.f32 %v1052, %v1116
  %v1181 = vmul.f32 %v1053, %v1117
  %v1182 = vmul.f32 %v1054, %v1118
  %v1183 = vmul.f32 %v1055, %v1119
  %v1184 = vmul.f32 %v1056, %v1120
  %v1185 = vmul.f32 %v1057, %v1121
  %v1186 = vmul.f32 %v1058, %v1122
  %v1187 = vmul.f32 %v1059, %v1123
  %v1188 = vmul.f32 %v1060, %v1124
  %v1189 = vmul.f32 %v1061, %v1125
  %v1190 = vmul.f32 %v1062, %v1126
  %v1191 = vmul.f32 %v1063, %v1127
  %v1192 = vmul.f32 %v1064, %v1128
  %v1193 = vmul.f32 %v1065, %v1129
  %v1194 = vmul.f32 %v1066, %v1130
  %v1195 = vmul.f32 %v1067, %v1131
  %v1196 = vmul.f32 %v1068, %v1132
  %v1197 = vmul.f32 %v1069, %v1133
  %v1198 = vmul.f32 %v1070, %v1134
  %v1199 = vmul.f32 %v1071, %v1135
  %v1200 = vmul.f32 %v1072, %v1136
  %v1201 = vmul.f32 %v1073, %v1137
  %v1202 = vmul.f32 %v1074, %v1138
  %v1203 = vmul.f32 %v1075, %v1139
  %v1204 = vmul.f32 %v1076, %v1140
  %v1205 = vmul.f32 %v1077, %v1141
  %v1206 = vmul.f32 %v1078, %v1142
  %v1207 = vmul.f32 %v1079, %v1143
  %v1208 = vmul.f32 %v1080, %v1144
  %v1209 = vmul.f32 %v1081, %v1145
  %v1210 = vmul.f32 %v1082, %v1146
  %v1211 = vmul.f32 %v1083, %v1147
  %v1212 = vmul.f32 %v1084, %v1148
  %v1213 = vmul.f32 %v1085, %v1149
  %v1214 = vmul.f32 %v1086, %v1150
  %v1215 = vmul.f32 %v1087, %v1151
  %v1216 = vmul.f32 %v1088, %v1152
  %v1217 = vmul.f32 %v1089, %v1153
  %v1218 = vmul.f32 %v1090, %v1154
  %v1219 = vmul.f32 %v1091, %v1155
  %v1220 = vmul.f32 %v1092, %v1156
  %v1221 = vmul.f32 %v1093, %v1157
  %v1222 = vmul.f32 %v1094, %v1158
  %v1223 = vmul.f32 %v1095, %v1159
  %v1224 = vmul.f32 %v1096, %v1160
  %v1225 = vmul.f32 %v1097, %v1161
  %v1226 = vmul.f32 %v1098, %v1162
  %v1227 = vmul.f32 %v1099, %v1163
  %v1228 = vmul.f32 %v1100, %v1164
  %v1229 = vmul.f32 %v1101, %v1165
  %v1230 = vmul.f32 %v1102, %v1166
  %v1231 = vmul.f32 %v1103, %v1167
  %v1232 = vmul.f32 %v1104, %v1168
  %v1233 = vmul.f32 %v1105, %v1169
  %v1234 = vmul.f32 %v1106, %v1170
  %v1235 = vmul.f32 %v1107, %v1171
  %v1236 = vmul.f32 %v1108, %v1172
  %v1237 = vmul.f32 %v1109, %v1173
  %v1238 = vmul.f32 %v1110, %v1174
  %v1239 = vmul.f32 %v1111, %v1175
  %v1240 = vmul.f32 %v1112, %v1176
  %v1241 = vmul.f32 %v1113, %v1177
  %v1242 = vmul.f32 %v1114, %v1178
  %v1243 = vmul.f32 %v1115, %v1179
  %v1244 = vsub.f32 2.0, %v1180
  %v1245 = vsub.f32 2.0, %v1181
  %v1246 = vsub.f32 2.0, %v1182
  %v1247 = vsub.f32 2.0, %v1183
  %v1248 = vsub.f32 2.0, %v1184
  %v1249 = vsub.f32 2.0, %v1185
  %v1250 = vsub.f32 2.0, %v1186
  %v1251 = vsub.f32 2.0, %v1187
  %v1252 = vsub.f32 2.0, %v1188
  %v1253 = vsub.f32 2.0, %v1189
  %v1254 = vsub.f32 2.0, %v1190
  %v1255 = vsub.f32 2.0, %v1191
  %v1256 = vsub.f32 2.0, %v1192
  %v1257 = vsub.f32 2.0, %v1193
  %v1258 = vsub.f32 2.0, %v1194
  %v1259 = vsub.f32 2.0, %v1195
  %v1260 = vsub.f32 2.0, %v1196
  %v1261 = vsub.f32 2.0, %v1197
  %v1262 = vsub.f32 2.0, %v1198
  %v1263 = vsub.f32 2.0, %v1199
  %v1264 = vsub.f32 2.0, %v1200
  %v1265 = vsub.f32 2.0, %v1201
  %v1266 = vsub.f32 2.0, %v1202
  %v1267 = vsub.f32 2.0, %v1203
  %v1268 = vsub.f32 2.0, %v1204
  %v1269 = vsub.f32 2.0, %v1205
  %v1270 = vsub.f32 2.0, %v1206
  %v1271 = vsub.f32 2.0, %v1207
  %v1272 = vsub.f32 2.0, %v1208
  %v1273 = vsub.f32 2.0, %v1209
  %v1274 = vsub.f32 2.0, %v1210
  %v1275 = vsub.f32 2.0, %v1211
  %v1276 = vsub.f32 2.0, %v1212
  %v1277 = vsub.f32 2.0, %v1213
  %v1278 = vsub.f32 2.0, %v1214
  %v1279 = vsub.f32 2.0, %v1215
  %v1280 = vsub.f32 2.0, %v1216
  %v1281 = vsub.f32 2.0, %v1217
  %v1282 = vsub.f32 2.0, %v1218
  %v1283 = vsub.f32 2.0, %v1219
  %v1284 = vsub.f32 2.0, %v1220
  %v1285 = vsub.f32 2.0, %v1221
  %v1286 = vsub.f32 2.0, %v1222
  %v1287 = vsub.f32 2.0, %v1223
  %v1288 = vsub.f32 2.0, %v1224
  %v1289 = vsub.f32 2.0, %v1225
  %v1290 = vsub.f32 2.0, %v1226
  %v1291 = vsub.f32 2.0, %v1227
  %v1292 = vsub.f32 2.0, %v1228
  %v1293 = vsub.f32 2.0, %v1229
  %v1294 = vsub.f32 2.0, %v1230
  %v1295 = vsub.f32 2.0, %v1231
  %v1296 = vsub.f32 2.0, %v1232
  %v1297 = vsub.f32 2.0, %v1233
  %v1298 = vsub.f32 2.0, %v1234
  %v1299 = vsub.f32 2.0, %v1235
  %v1300 = vsub.f32 2.0, %v1236
  %v1301 = vsub.f32 2.0, %v1237
  %v1302 = vsub.f32 2.0, %v1238
  %v1303 = vsub.f32 2.0, %v1239
  %v1304 = vsub.f32 2.0, %v1240
  %v1305 = vsub.f32 2.0, %v1241
  %v1306 = vsub.f32 2.0, %v1242
  %v1307 = vsub.f32 2.0, %v1243
  %v1308 = vmul.f32 %v1116, %v1244
  %v1309 = vmul.f32 %v1117, %v1245
  %v1310 = vmul.f32 %v1118, %v1246
  %v1311 = vmul.f32 %v1119, %v1247
  %v1312 = vmul.f32 %v1120, %v1248
  %v1313 = vmul.f32 %v1121, %v1249
  %v1314 = vmul.f32 %v1122, %v1250
  %v1315 = vmul.f32 %v1123, %v1251
  %v1316 = vmul.f32 %v1124, %v1252
  %v1317 = vmul.f32 %v1125, %v1253
  %v1318 = vmul.f32 %v1126, %v1254
  %v1319 = vmul.f32 %v1127, %v1255
  %v1320 = vmul.f32 %v1128, %v1256
  %v1321 = vmul.f32 %v1129, %v1257
  %v1322 = vmul.f32 %v1130, %v1258
  %v1323 = vmul.f32 %v1131, %v1259
  %v1324 = vmul.f32 %v1132, %v1260
  %v1325 = vmul.f32 %v1133, %v1261
  %v1326 = vmul.f32 %v1134, %v1262
  %v1327 = vmul.f32 %v1135, %v1263
  %v1328 = vmul.f32 %v1136, %v1264
  %v1329 = vmul.f32 %v1137, %v1265
  %v1330 = vmul.f32 %v1138, %v1266
  %v1331 = vmul.f32 %v1139, %v1267
  %v1332 = vmul.f32 %v1140, %v1268
  %v1333 = vmul.f32 %v1141, %v1269
  %v1334 = vmul.f32 %v1142, %v1270
  %v1335 = vmul.f32 %v1143, %v1271
  %v1336 = vmul.f32 %v1144, %v1272
  %v1337 = vmul.f32 %v1145, %v1273
  %v1338 = vmul.f32 %v1146, %v1274
  %v1339 = vmul.f32 %v1147, %v1275
  %v1340 = vmul.f32 %v1148, %v1276
  %v1341 = vmul.f32 %v1149, %v1277
  %v1342 = vmul.f32 %v1150, %v1278
  %v1343 = vmul.f32 %v1151, %v1279
  %v1344 = vmul.f32 %v1152, %v1280
  %v1345 = vmul.f32 %v1153, %v1281
  %v1346 = vmul.f32 %v1154, %v1282
  %v1347 = vmul.f32 %v1155, %v1283
  %v1348 = vmul.f32 %v1156, %v1284
  %v1349 = vmul.f32 %v1157, %v1285
  %v1350 = vmul.f32 %v1158, %v1286
  %v1351 = vmul.f32 %v1159, %v1287
  %v1352 = vmul.f32 %v1160, %v1288
  %v1353 = vmul.f32 %v1161, %v1289
  %v1354 = vmul.f32 %v1162, %v1290
  %v1355 = vmul.f32 %v1163, %v1291
  %v1356 = vmul.f32 %v1164, %v1292
  %v1357 = vmul.f32 %v1165, %v1293
  %v1358 = vmul.f32 %v1166, %v1294
  %v1359 = vmul.f32 %v1167, %v1295
  %v1360 = vmul.f32 %v1168, %v1296
  %v1361 = vmul.f32 %v1169, %v1297
  %v1362 = vmul.f32 %v1170, %v1298
  %v1363 = vmul.f32 %v1171, %v1299
  %v1364 = vmul.f32 %v1172, %v1300
  %v1365 = vmul.f32 %v1173, %v1301
  %v1366 = vmul.f32 %v1174, %v1302
  %v1367 = vmul.f32 %v1175, %v1303
  %v1368 = vmul.f32 %v1176, %v1304
  %v1369 = vmul.f32 %v1177, %v1305
  %v1370 = vmul.f32 %v1178, %v1306
  %v1371 = vmul.f32 %v1179, %v1307
  %v1372 = vmul.f32 %v1308, 1.0614054
  %v1373 = vmul.f32 %v1309, 1.0614054
  %v1374 = vmul.f32 %v1310, 1.0614054
  %v1375 = vmul.f32 %v1311, 1.0614054
  %v1376 = vmul.f32 %v1312, 1.0614054
  %v1377 = vmul.f32 %v1313, 1.0614054
  %v1378 = vmul.f32 %v1314, 1.0614054
  %v1379 = vmul.f32 %v1315, 1.0614054
  %v1380 = vmul.f32 %v1316, 1.0614054
  %v1381 = vmul.f32 %v1317, 1.0614054
  %v1382 = vmul.f32 %v1318, 1.0614054
  %v1383 = vmul.f32 %v1319, 1.0614054
  %v1384 = vmul.f32 %v1320, 1.0614054
  %v1385 = vmul.f32 %v1321, 1.0614054
  %v1386 = vmul.f32 %v1322, 1.0614054
  %v1387 = vmul.f32 %v1323, 1.0614054
  %v1388 = vmul.f32 %v1324, 1.0614054
  %v1389 = vmul.f32 %v1325, 1.0614054
  %v1390 = vmul.f32 %v1326, 1.0614054
  %v1391 = vmul.f32 %v1327, 1.0614054
  %v1392 = vmul.f32 %v1328, 1.0614054
  %v1393 = vmul.f32 %v1329, 1.0614054
  %v1394 = vmul.f32 %v1330, 1.0614054
  %v1395 = vmul.f32 %v1331, 1.0614054
  %v1396 = vmul.f32 %v1332, 1.0614054
  %v1397 = vmul.f32 %v1333, 1.0614054
  %v1398 = vmul.f32 %v1334, 1.0614054
  %v1399 = vmul.f32 %v1335, 1.0614054
  %v1400 = vmul.f32 %v1336, 1.0614054
  %v1401 = vmul.f32 %v1337, 1.0614054
  %v1402 = vmul.f32 %v1338, 1.0614054
  %v1403 = vmul.f32 %v1339, 1.0614054
  %v1404 = vmul.f32 %v1340, 1.0614054
  %v1405 = vmul.f32 %v1341, 1.0614054
  %v1406 = vmul.f32 %v1342, 1.0614054
  %v1407 = vmul.f32 %v1343, 1.0614054
  %v1408 = vmul.f32 %v1344, 1.0614054
  %v1409 = vmul.f32 %v1345, 1.0614054
  %v1410 = vmul.f32 %v1346, 1.0614054
  %v1411 = vmul.f32 %v1347, 1.0614054
  %v1412 = vmul.f32 %v1348, 1.0614054
  %v1413 = vmul.f32 %v1349, 1.0614054
  %v1414 = vmul.f32 %v1350, 1.0614054
  %v1415 = vmul.f32 %v1351, 1.0614054
  %v1416 = vmul.f32 %v1352, 1.0614054
  %v1417 = vmul.f32 %v1353, 1.0614054
  %v1418 = vmul.f32 %v1354, 1.0614054
  %v1419 = vmul.f32 %v1355, 1.0614054
  %v1420 = vmul.f32 %v1356, 1.0614054
  %v1421 = vmul.f32 %v1357, 1.0614054
  %v1422 = vmul.f32 %v1358, 1.0614054
  %v1423 = vmul.f32 %v1359, 1.0614054
  %v1424 = vmul.f32 %v1360, 1.0614054
  %v1425 = vmul.f32 %v1361, 1.0614054
  %v1426 = vmul.f32 %v1362, 1.0614054
  %v1427 = vmul.f32 %v1363, 1.0614054
  %v1428 = vmul.f32 %v1364, 1.0614054
  %v1429 = vmul.f32 %v1365, 1.0614054
  %v1430 = vmul.f32 %v1366, 1.0614054
  %v1431 = vmul.f32 %v1367, 1.0614054
  %v1432 = vmul.f32 %v1368, 1.0614054
  %v1433 = vmul.f32 %v1369, 1.0614054
  %v1434 = vmul.f32 %v1370, 1.0614054
  %v1435 = vmul.f32 %v1371, 1.0614054
  %v1436 = vadd.f32 %v1372, -1.4531521
  %v1437 = vadd.f32 %v1373, -1.4531521
  %v1438 = vadd.f32 %v1374, -1.4531521
  %v1439 = vadd.f32 %v1375, -1.4531521
  %v1440 = vadd.f32 %v1376, -1.4531521
  %v1441 = vadd.f32 %v1377, -1.4531521
  %v1442 = vadd.f32 %v1378, -1.4531521
  %v1443 = vadd.f32 %v1379, -1.4531521
  %v1444 = vadd.f32 %v1380, -1.4531521
  %v1445 = vadd.f32 %v1381, -1.4531521
  %v1446 = vadd.f32 %v1382, -1.4531521
  %v1447 = vadd.f32 %v1383, -1.4531521
  %v1448 = vadd.f32 %v1384, -1.4531521
  %v1449 = vadd.f32 %v1385, -1.4531521
  %v1450 = vadd.f32 %v1386, -1.4531521
  %v1451 = vadd.f32 %v1387, -1.4531521
  %v1452 = vadd.f32 %v1388, -1.4531521
  %v1453 = vadd.f32 %v1389, -1.4531521
  %v1454 = vadd.f32 %v1390, -1.4531521
  %v1455 = vadd.f32 %v1391, -1.4531521
  %v1456 = vadd.f32 %v1392, -1.4531521
  %v1457 = vadd.f32 %v1393, -1.4531521
  %v1458 = vadd.f32 %v1394, -1.4531521
  %v1459 = vadd.f32 %v1395, -1.4531521
  %v1460 = vadd.f32 %v1396, -1.4531521
  %v1461 = vadd.f32 %v1397, -1.4531521
  %v1462 = vadd.f32 %v1398, -1.4531521
  %v1463 = vadd.f32 %v1399, -1.4531521
  %v1464 = vadd.f32 %v1400, -1.4531521
  %v1465 = vadd.f32 %v1401, -1.4531521
  %v1466 = vadd.f32 %v1402, -1.4531521
  %v1467 = vadd.f32 %v1403, -1.4531521
  %v1468 = vadd.f32 %v1404, -1.4531521
  %v1469 = vadd.f32 %v1405, -1.4531521
  %v1470 = vadd.f32 %v1406, -1.4531521
  %v1471 = vadd.f32 %v1407, -1.4531521
  %v1472 = vadd.f32 %v1408, -1.4531521
  %v1473 = vadd.f32 %v1409, -1.4531521
  %v1474 = vadd.f32 %v1410, -1.4531521
  %v1475 = vadd.f32 %v1411, -1.4531521
  %v1476 = vadd.f32 %v1412, -1.4531521
  %v1477 = vadd.f32 %v1413, -1.4531521
  %v1478 = vadd.f32 %v1414, -1.4531521
  %v1479 = vadd.f32 %v1415, -1.4531521
  %v1480 = vadd.f32 %v1416, -1.4531521
  %v1481 = vadd.f32 %v1417, -1.4531521
  %v1482 = vadd.f32 %v1418, -1.4531521
  %v1483 = vadd.f32 %v1419, -1.4531521
  %v1484 = vadd.f32 %v1420, -1.4531521
  %v1485 = vadd.f32 %v1421, -1.4531521
  %v1486 = vadd.f32 %v1422, -1.4531521
  %v1487 = vadd.f32 %v1423, -1.4531521
  %v1488 = vadd.f32 %v1424, -1.4531521
  %v1489 = vadd.f32 %v1425, -1.4531521
  %v1490 = vadd.f32 %v1426, -1.4531521
  %v1491 = vadd.f32 %v1427, -1.4531521
  %v1492 = vadd.f32 %v1428, -1.4531521
  %v1493 = vadd.f32 %v1429, -1.4531521
  %v1494 = vadd.f32 %v1430, -1.4531521
  %v1495 = vadd.f32 %v1431, -1.4531521
  %v1496 = vadd.f32 %v1432, -1.4531521
  %v1497 = vadd.f32 %v1433, -1.4531521
  %v1498 = vadd.f32 %v1434, -1.4531521
  %v1499 = vadd.f32 %v1435, -1.4531521
  %v1500 = vmul.f32 %v1436, %v1308
  %v1501 = vmul.f32 %v1437, %v1309
  %v1502 = vmul.f32 %v1438, %v1310
  %v1503 = vmul.f32 %v1439, %v1311
  %v1504 = vmul.f32 %v1440, %v1312
  %v1505 = vmul.f32 %v1441, %v1313
  %v1506 = vmul.f32 %v1442, %v1314
  %v1507 = vmul.f32 %v1443, %v1315
  %v1508 = vmul.f32 %v1444, %v1316
  %v1509 = vmul.f32 %v1445, %v1317
  %v1510 = vmul.f32 %v1446, %v1318
  %v1511 = vmul.f32 %v1447, %v1319
  %v1512 = vmul.f32 %v1448, %v1320
  %v1513 = vmul.f32 %v1449, %v1321
  %v1514 = vmul.f32 %v1450, %v1322
  %v1515 = vmul.f32 %v1451, %v1323
  %v1516 = vmul.f32 %v1452, %v1324
  %v1517 = vmul.f32 %v1453, %v1325
  %v1518 = vmul.f32 %v1454, %v1326
  %v1519 = vmul.f32 %v1455, %v1327
  %v1520 = vmul.f32 %v1456, %v1328
  %v1521 = vmul.f32 %v1457, %v1329
  %v1522 = vmul.f32 %v1458, %v1330
  %v1523 = vmul.f32 %v1459, %v1331
  %v1524 = vmul.f32 %v1460, %v1332
  %v1525 = vmul.f32 %v1461, %v1333
  %v1526 = vmul.f32 %v1462, %v1334
  %v1527 = vmul.f32 %v1463, %v1335
  %v1528 = vmul.f32 %v1464, %v1336
  %v1529 = vmul.f32 %v1465, %v1337
  %v1530 = vmul.f32 %v1466, %v1338
  %v1531 = vmul.f32 %v1467, %v1339
  %v1532 = vmul.f32 %v1468, %v1340
  %v1533 = vmul.f32 %v1469, %v1341
  %v1534 = vmul.f32 %v1470, %v1342
  %v1535 = vmul.f32 %v1471, %v1343
  %v1536 = vmul.f32 %v1472, %v1344
  %v1537 = vmul.f32 %v1473, %v1345
  %v1538 = vmul.f32 %v1474, %v1346
  %v1539 = vmul.f32 %v1475, %v1347
  %v1540 = vmul.f32 %v1476, %v1348
  %v1541 = vmul.f32 %v1477, %v1349
  %v1542 = vmul.f32 %v1478, %v1350
  %v1543 = vmul.f32 %v1479, %v1351
  %v1544 = vmul.f32 %v1480, %v1352
  %v1545 = vmul.f32 %v1481, %v1353
  %v1546 = vmul.f32 %v1482, %v1354
  %v1547 = vmul.f32 %v1483, %v1355
  %v1548 = vmul.f32 %v1484, %v1356
  %v1549 = vmul.f32 %v1485, %v1357
  %v1550 = vmul.f32 %v1486, %v1358
  %v1551 = vmul.f32 %v1487, %v1359
  %v1552 = vmul.f32 %v1488, %v1360
  %v1553 = vmul.f32 %v1489, %v1361
  %v1554 = vmul.f32 %v1490, %v1362
  %v1555 = vmul.f32 %v1491, %v1363
  %v1556 = vmul.f32 %v1492, %v1364
  %v1557 = vmul.f32 %v1493, %v1365
  %v1558 = vmul.f32 %v1494, %v1366
  %v1559 = vmul.f32 %v1495, %v1367
  %v1560 = vmul.f32 %v1496, %v1368
  %v1561 = vmul.f32 %v1497, %v1369
  %v1562 = vmul.f32 %v1498, %v1370
  %v1563 = vmul.f32 %v1499, %v1371
  %v1564 = vadd.f32 %v1500, 1.4214138
  %v1565 = vadd.f32 %v1501, 1.4214138
  %v1566 = vadd.f32 %v1502, 1.4214138
  %v1567 = vadd.f32 %v1503, 1.4214138
  %v1568 = vadd.f32 %v1504, 1.4214138
  %v1569 = vadd.f32 %v1505, 1.4214138
  %v1570 = vadd.f32 %v1506, 1.4214138
  %v1571 = vadd.f32 %v1507, 1.4214138
  %v1572 = vadd.f32 %v1508, 1.4214138
  %v1573 = vadd.f32 %v1509, 1.4214138
  %v1574 = vadd.f32 %v1510, 1.4214138
  %v1575 = vadd.f32 %v1511, 1.4214138
  %v1576 = vadd.f32 %v1512, 1.4214138
  %v1577 = vadd.f32 %v1513, 1.4214138
  %v1578 = vadd.f32 %v1514, 1.4214138
  %v1579 = vadd.f32 %v1515, 1.4214138
  %v1580 = vadd.f32 %v1516, 1.4214138
  %v1581 = vadd.f32 %v1517, 1.4214138
  %v1582 = vadd.f32 %v1518, 1.4214138
  %v1583 = vadd.f32 %v1519, 1.4214138
  %v1584 = vadd.f32 %v1520, 1.4214138
  %v1585 = vadd.f32 %v1521, 1.4214138
  %v1586 = vadd.f32 %v1522, 1.4214138
  %v1587 = vadd.f32 %v1523, 1.4214138
  %v1588 = vadd.f32 %v1524, 1.4214138
  %v1589 = vadd.f32 %v1525, 1.4214138
  %v1590 = vadd.f32 %v1526, 1.4214138
  %v1591 = vadd.f32 %v1527, 1.4214138
  %v1592 = vadd.f32 %v1528, 1.4214138
  %v1593 = vadd.f32 %v1529, 1.4214138
  %v1594 = vadd.f32 %v1530, 1.4214138
  %v1595 = vadd.f32 %v1531, 1.4214138
  %v1596 = vadd.f32 %v1532, 1.4214138
  %v1597 = vadd.f32 %v1533, 1.4214138
  %v1598 = vadd.f32 %v1534, 1.4214138
  %v1599 = vadd.f32 %v1535, 1.4214138
  %v1600 = vadd.f32 %v1536, 1.4214138
  %v1601 = vadd.f32 %v1537, 1.4214138
  %v1602 = vadd.f32 %v1538, 1.4214138
  %v1603 = vadd.f32 %v1539, 1.4214138
  %v1604 = vadd.f32 %v1540, 1.4214138
  %v1605 = vadd.f32 %v1541, 1.4214138
  %v1606 = vadd.f32 %v1542, 1.4214138
  %v1607 = vadd.f32 %v1543, 1.4214138
  %v1608 = vadd.f32 %v1544, 1.4214138
  %v1609 = vadd.f32 %v1545, 1.4214138
  %v1610 = vadd.f32 %v1546, 1.4214138
  %v1611 = vadd.f32 %v1547, 1.4214138
  %v1612 = vadd.f32 %v1548, 1.4214138
  %v1613 = vadd.f32 %v1549, 1.4214138
  %v1614 = vadd.f32 %v1550, 1.4214138
  %v1615 = vadd.f32 %v1551, 1.4214138
  %v1616 = vadd.f32 %v1552, 1.4214138
  %v1617 = vadd.f32 %v1553, 1.4214138
  %v1618 = vadd.f32 %v1554, 1.4214138
  %v1619 = vadd.f32 %v1555, 1.4214138
  %v1620 = vadd.f32 %v1556, 1.4214138
  %v1621 = vadd.f32 %v1557, 1.4214138
  %v1622 = vadd.f32 %v1558, 1.4214138
  %v1623 = vadd.f32 %v1559, 1.4214138
  %v1624 = vadd.f32 %v1560, 1.4214138
  %v1625 = vadd.f32 %v1561, 1.4214138
  %v1626 = vadd.f32 %v1562, 1.4214138
  %v1627 = vadd.f32 %v1563, 1.4214138
  %v1628 = vmul.f32 %v1564, %v1308
  %v1629 = vmul.f32 %v1565, %v1309
  %v1630 = vmul.f32 %v1566, %v1310
  %v1631 = vmul.f32 %v1567, %v1311
  %v1632 = vmul.f32 %v1568, %v1312
  %v1633 = vmul.f32 %v1569, %v1313
  %v1634 = vmul.f32 %v1570, %v1314
  %v1635 = vmul.f32 %v1571, %v1315
  %v1636 = vmul.f32 %v1572, %v1316
  %v1637 = vmul.f32 %v1573, %v1317
  %v1638 = vmul.f32 %v1574, %v1318
  %v1639 = vmul.f32 %v1575, %v1319
  %v1640 = vmul.f32 %v1576, %v1320
  %v1641 = vmul.f32 %v1577, %v1321
  %v1642 = vmul.f32 %v1578, %v1322
  %v1643 = vmul.f32 %v1579, %v1323
  %v1644 = vmul.f32 %v1580, %v1324
  %v1645 = vmul.f32 %v1581, %v1325
  %v1646 = vmul.f32 %v1582, %v1326
  %v1647 = vmul.f32 %v1583, %v1327
  %v1648 = vmul.f32 %v1584, %v1328
  %v1649 = vmul.f32 %v1585, %v1329
  %v1650 = vmul.f32 %v1586, %v1330
  %v1651 = vmul.f32 %v1587, %v1331
  %v1652 = vmul.f32 %v1588, %v1332
  %v1653 = vmul.f32 %v1589, %v1333
  %v1654 = vmul.f32 %v1590, %v1334
  %v1655 = vmul.f32 %v1591, %v1335
  %v1656 = vmul.f32 %v1592, %v1336
  %v1657 = vmul.f32 %v1593, %v1337
  %v1658 = vmul.f32 %v1594, %v1338
  %v1659 = vmul.f32 %v1595, %v1339
  %v1660 = vmul.f32 %v1596, %v1340
  %v1661 = vmul.f32 %v1597, %v1341
  %v1662 = vmul.f32 %v1598, %v1342
  %v1663 = vmul.f32 %v1599, %v1343
  %v1664 = vmul.f32 %v1600, %v1344
  %v1665 = vmul.f32 %v1601, %v1345
  %v1666 = vmul.f32 %v1602, %v1346
  %v1667 = vmul.f32 %v1603, %v1347
  %v1668 = vmul.f32 %v1604, %v1348
  %v1669 = vmul.f32 %v1605, %v1349
  %v1670 = vmul.f32 %v1606, %v1350
  %v1671 = vmul.f32 %v1607, %v1351
  %v1672 = vmul.f32 %v1608, %v1352
  %v1673 = vmul.f32 %v1609, %v1353
  %v1674 = vmul.f32 %v1610, %v1354
  %v1675 = vmul.f32 %v1611, %v1355
  %v1676 = vmul.f32 %v1612, %v1356
  %v1677 = vmul.f32 %v1613, %v1357
  %v1678 = vmul.f32 %v1614, %v1358
  %v1679 = vmul.f32 %v1615, %v1359
  %v1680 = vmul.f32 %v1616, %v1360
  %v1681 = vmul.f32 %v1617, %v1361
  %v1682 = vmul.f32 %v1618, %v1362
  %v1683 = vmul.f32 %v1619, %v1363
  %v1684 = vmul.f32 %v1620, %v1364
  %v1685 = vmul.f32 %v1621, %v1365
  %v1686 = vmul.f32 %v1622, %v1366
  %v1687 = vmul.f32 %v1623, %v1367
  %v1688 = vmul.f32 %v1624, %v1368
  %v1689 = vmul.f32 %v1625, %v1369
  %v1690 = vmul.f32 %v1626, %v1370
  %v1691 = vmul.f32 %v1627, %v1371
  %v1692 = vadd.f32 %v1628, -0.28449672
  %v1693 = vadd.f32 %v1629, -0.28449672
  %v1694 = vadd.f32 %v1630, -0.28449672
  %v1695 = vadd.f32 %v1631, -0.28449672
  %v1696 = vadd.f32 %v1632, -0.28449672
  %v1697 = vadd.f32 %v1633, -0.28449672
  %v1698 = vadd.f32 %v1634, -0.28449672
  %v1699 = vadd.f32 %v1635, -0.28449672
  %v1700 = vadd.f32 %v1636, -0.28449672
  %v1701 = vadd.f32 %v1637, -0.28449672
  %v1702 = vadd.f32 %v1638, -0.28449672
  %v1703 = vadd.f32 %v1639, -0.28449672
  %v1704 = vadd.f32 %v1640, -0.28449672
  %v1705 = vadd.f32 %v1641, -0.28449672
  %v1706 = vadd.f32 %v1642, -0.28449672
  %v1707 = vadd.f32 %v1643, -0.28449672
  %v1708 = vadd.f32 %v1644, -0.28449672
  %v1709 = vadd.f32 %v1645, -0.28449672
  %v1710 = vadd.f32 %v1646, -0.28449672
  %v1711 = vadd.f32 %v1647, -0.28449672
  %v1712 = vadd.f32 %v1648, -0.28449672
  %v1713 = vadd.f32 %v1649, -0.28449672
  %v1714 = vadd.f32 %v1650, -0.28449672
  %v1715 = vadd.f32 %v1651, -0.28449672
  %v1716 = vadd.f32 %v1652, -0.28449672
  %v1717 = vadd.f32 %v1653, -0.28449672
  %v1718 = vadd.f32 %v1654, -0.28449672
  %v1719 = vadd.f32 %v1655, -0.28449672
  %v1720 = vadd.f32 %v1656, -0.28449672
  %v1721 = vadd.f32 %v1657, -0.28449672
  %v1722 = vadd.f32 %v1658, -0.28449672
  %v1723 = vadd.f32 %v1659, -0.28449672
  %v1724 = vadd.f32 %v1660, -0.28449672
  %v1725 = vadd.f32 %v1661, -0.28449672
  %v1726 = vadd.f32 %v1662, -0.28449672
  %v1727 = vadd.f32 %v1663, -0.28449672
  %v1728 = vadd.f32 %v1664, -0.28449672
  %v1729 = vadd.f32 %v1665, -0.28449672
  %v1730 = vadd.f32 %v1666, -0.28449672
  %v1731 = vadd.f32 %v1667, -0.28449672
  %v1732 = vadd.f32 %v1668, -0.28449672
  %v1733 = vadd.f32 %v1669, -0.28449672
  %v1734 = vadd.f32 %v1670, -0.28449672
  %v1735 = vadd.f32 %v1671, -0.28449672
  %v1736 = vadd.f32 %v1672, -0.28449672
  %v1737 = vadd.f32 %v1673, -0.28449672
  %v1738 = vadd.f32 %v1674, -0.28449672
  %v1739 = vadd.f32 %v1675, -0.28449672
  %v1740 = vadd.f32 %v1676, -0.28449672
  %v1741 = vadd.f32 %v1677, -0.28449672
  %v1742 = vadd.f32 %v1678, -0.28449672
  %v1743 = vadd.f32 %v1679, -0.28449672
  %v1744 = vadd.f32 %v1680, -0.28449672
  %v1745 = vadd.f32 %v1681, -0.28449672
  %v1746 = vadd.f32 %v1682, -0.28449672
  %v1747 = vadd.f32 %v1683, -0.28449672
  %v1748 = vadd.f32 %v1684, -0.28449672
  %v1749 = vadd.f32 %v1685, -0.28449672
  %v1750 = vadd.f32 %v1686, -0.28449672
  %v1751 = vadd.f32 %v1687, -0.28449672
  %v1752 = vadd.f32 %v1688, -0.28449672
  %v1753 = vadd.f32 %v1689, -0.28449672
  %v1754 = vadd.f32 %v1690, -0.28449672
  %v1755 = vadd.f32 %v1691, -0.28449672
  %v1756 = vmul.f32 %v1692, %v1308
  %v1757 = vmul.f32 %v1693, %v1309
  %v1758 = vmul.f32 %v1694, %v1310
  %v1759 = vmul.f32 %v1695, %v1311
  %v1760 = vmul.f32 %v1696, %v1312
  %v1761 = vmul.f32 %v1697, %v1313
  %v1762 = vmul.f32 %v1698, %v1314
  %v1763 = vmul.f32 %v1699, %v1315
  %v1764 = vmul.f32 %v1700, %v1316
  %v1765 = vmul.f32 %v1701, %v1317
  %v1766 = vmul.f32 %v1702, %v1318
  %v1767 = vmul.f32 %v1703, %v1319
  %v1768 = vmul.f32 %v1704, %v1320
  %v1769 = vmul.f32 %v1705, %v1321
  %v1770 = vmul.f32 %v1706, %v1322
  %v1771 = vmul.f32 %v1707, %v1323
  %v1772 = vmul.f32 %v1708, %v1324
  %v1773 = vmul.f32 %v1709, %v1325
  %v1774 = vmul.f32 %v1710, %v1326
  %v1775 = vmul.f32 %v1711, %v1327
  %v1776 = vmul.f32 %v1712, %v1328
  %v1777 = vmul.f32 %v1713, %v1329
  %v1778 = vmul.f32 %v1714, %v1330
  %v1779 = vmul.f32 %v1715, %v1331
  %v1780 = vmul.f32 %v1716, %v1332
  %v1781 = vmul.f32 %v1717, %v1333
  %v1782 = vmul.f32 %v1718, %v1334
  %v1783 = vmul.f32 %v1719, %v1335
  %v1784 = vmul.f32 %v1720, %v1336
  %v1785 = vmul.f32 %v1721, %v1337
  %v1786 = vmul.f32 %v1722, %v1338
  %v1787 = vmul.f32 %v1723, %v1339
  %v1788 = vmul.f32 %v1724, %v1340
  %v1789 = vmul.f32 %v1725, %v1341
  %v1790 = vmul.f32 %v1726, %v1342
  %v1791 = vmul.f32 %v1727, %v1343
  %v1792 = vmul.f32 %v1728, %v1344
  %v1793 = vmul.f32 %v1729, %v1345
  %v1794 = vmul.f32 %v1730, %v1346
  %v1795 = vmul.f32 %v1731, %v1347
  %v1796 = vmul.f32 %v1732, %v1348
  %v1797 = vmul.f32 %v1733, %v1349
  %v1798 = vmul.f32 %v1734, %v1350
  %v1799 = vmul.f32 %v1735, %v1351
  %v1800 = vmul.f32 %v1736, %v1352
  %v1801 = vmul.f32 %v1737, %v1353
  %v1802 = vmul.f32 %v1738, %v1354
  %v1803 = vmul.f32 %v1739, %v1355
  %v1804 = vmul.f32 %v1740, %v1356
  %v1805 = vmul.f32 %v1741, %v1357
  %v1806 = vmul.f32 %v1742, %v1358
  %v1807 = vmul.f32 %v1743, %v1359
  %v1808 = vmul.f32 %v1744, %v1360
  %v1809 = vmul.f32 %v1745, %v1361
  %v1810 = vmul.f32 %v1746, %v1362
  %v1811 = vmul.f32 %v1747, %v1363
  %v1812 = vmul.f32 %v1748, %v1364
  %v1813 = vmul.f32 %v1749, %v1365
  %v1814 = vmul.f32 %v1750, %v1366
  %v1815 = vmul.f32 %v1751, %v1367
  %v1816 = vmul.f32 %v1752, %v1368
  %v1817 = vmul.f32 %v1753, %v1369
  %v1818 = vmul.f32 %v1754, %v1370
  %v1819 = vmul.f32 %v1755, %v1371
  %v1820 = vadd.f32 %v1756, 0.2548296
  %v1821 = vadd.f32 %v1757, 0.2548296
  %v1822 = vadd.f32 %v1758, 0.2548296
  %v1823 = vadd.f32 %v1759, 0.2548296
  %v1824 = vadd.f32 %v1760, 0.2548296
  %v1825 = vadd.f32 %v1761, 0.2548296
  %v1826 = vadd.f32 %v1762, 0.2548296
  %v1827 = vadd.f32 %v1763, 0.2548296
  %v1828 = vadd.f32 %v1764, 0.2548296
  %v1829 = vadd.f32 %v1765, 0.2548296
  %v1830 = vadd.f32 %v1766, 0.2548296
  %v1831 = vadd.f32 %v1767, 0.2548296
  %v1832 = vadd.f32 %v1768, 0.2548296
  %v1833 = vadd.f32 %v1769, 0.2548296
  %v1834 = vadd.f32 %v1770, 0.2548296
  %v1835 = vadd.f32 %v1771, 0.2548296
  %v1836 = vadd.f32 %v1772, 0.2548296
  %v1837 = vadd.f32 %v1773, 0.2548296
  %v1838 = vadd.f32 %v1774, 0.2548296
  %v1839 = vadd.f32 %v1775, 0.2548296
  %v1840 = vadd.f32 %v1776, 0.2548296
  %v1841 = vadd.f32 %v1777, 0.2548296
  %v1842 = vadd.f32 %v1778, 0.2548296
  %v1843 = vadd.f32 %v1779, 0.2548296
  %v1844 = vadd.f32 %v1780, 0.2548296
  %v1845 = vadd.f32 %v1781, 0.2548296
  %v1846 = vadd.f32 %v1782, 0.2548296
  %v1847 = vadd.f32 %v1783, 0.2548296
  %v1848 = vadd.f32 %v1784, 0.2548296
  %v1849 = vadd.f32 %v1785, 0.2548296
  %v1850 = vadd.f32 %v1786, 0.2548296
  %v1851 = vadd.f32 %v1787, 0.2548296
  %v1852 = vadd.f32 %v1788, 0.2548296
  %v1853 = vadd.f32 %v1789, 0.2548296
  %v1854 = vadd.f32 %v1790, 0.2548296
  %v1855 = vadd.f32 %v1791, 0.2548296
  %v1856 = vadd.f32 %v1792, 0.2548296
  %v1857 = vadd.f32 %v1793, 0.2548296
  %v1858 = vadd.f32 %v1794, 0.2548296
  %v1859 = vadd.f32 %v1795, 0.2548296
  %v1860 = vadd.f32 %v1796, 0.2548296
  %v1861 = vadd.f32 %v1797, 0.2548296
  %v1862 = vadd.f32 %v1798, 0.2548296
  %v1863 = vadd.f32 %v1799, 0.2548296
  %v1864 = vadd.f32 %v1800, 0.2548296
  %v1865 = vadd.f32 %v1801, 0.2548296
  %v1866 = vadd.f32 %v1802, 0.2548296
  %v1867 = vadd.f32 %v1803, 0.2548296
  %v1868 = vadd.f32 %v1804, 0.2548296
  %v1869 = vadd.f32 %v1805, 0.2548296
  %v1870 = vadd.f32 %v1806, 0.2548296
  %v1871 = vadd.f32 %v1807, 0.2548296
  %v1872 = vadd.f32 %v1808, 0.2548296
  %v1873 = vadd.f32 %v1809, 0.2548296
  %v1874 = vadd.f32 %v1810, 0.2548296
  %v1875 = vadd.f32 %v1811, 0.2548296
  %v1876 = vadd.f32 %v1812, 0.2548296
  %v1877 = vadd.f32 %v1813, 0.2548296
  %v1878 = vadd.f32 %v1814, 0.2548296
  %v1879 = vadd.f32 %v1815, 0.2548296
  %v1880 = vadd.f32 %v1816, 0.2548296
  %v1881 = vadd.f32 %v1817, 0.2548296
  %v1882 = vadd.f32 %v1818, 0.2548296
  %v1883 = vadd.f32 %v1819, 0.2548296
  %v1884 = vmul.f32 %v1820, %v1308
  %v1885 = vmul.f32 %v1821, %v1309
  %v1886 = vmul.f32 %v1822, %v1310
  %v1887 = vmul.f32 %v1823, %v1311
  %v1888 = vmul.f32 %v1824, %v1312
  %v1889 = vmul.f32 %v1825, %v1313
  %v1890 = vmul.f32 %v1826, %v1314
  %v1891 = vmul.f32 %v1827, %v1315
  %v1892 = vmul.f32 %v1828, %v1316
  %v1893 = vmul.f32 %v1829, %v1317
  %v1894 = vmul.f32 %v1830, %v1318
  %v1895 = vmul.f32 %v1831, %v1319
  %v1896 = vmul.f32 %v1832, %v1320
  %v1897 = vmul.f32 %v1833, %v1321
  %v1898 = vmul.f32 %v1834, %v1322
  %v1899 = vmul.f32 %v1835, %v1323
  %v1900 = vmul.f32 %v1836, %v1324
  %v1901 = vmul.f32 %v1837, %v1325
  %v1902 = vmul.f32 %v1838, %v1326
  %v1903 = vmul.f32 %v1839, %v1327
  %v1904 = vmul.f32 %v1840, %v1328
  %v1905 = vmul.f32 %v1841, %v1329
  %v1906 = vmul.f32 %v1842, %v1330
  %v1907 = vmul.f32 %v1843, %v1331
  %v1908 = vmul.f32 %v1844, %v1332
  %v1909 = vmul.f32 %v1845, %v1333
  %v1910 = vmul.f32 %v1846, %v1334
  %v1911 = vmul.f32 %v1847, %v1335
  %v1912 = vmul.f32 %v1848, %v1336
  %v1913 = vmul.f32 %v1849, %v1337
  %v1914 = vmul.f32 %v1850, %v1338
  %v1915 = vmul.f32 %v1851, %v1339
  %v1916 = vmul.f32 %v1852, %v1340
  %v1917 = vmul.f32 %v1853, %v1341
  %v1918 = vmul.f32 %v1854, %v1342
  %v1919 = vmul.f32 %v1855, %v1343
  %v1920 = vmul.f32 %v1856, %v1344
  %v1921 = vmul.f32 %v1857, %v1345
  %v1922 = vmul.f32 %v1858, %v1346
  %v1923 = vmul.f32 %v1859, %v1347
  %v1924 = vmul.f32 %v1860, %v1348
  %v1925 = vmul.f32 %v1861, %v1349
  %v1926 = vmul.f32 %v1862, %v1350
  %v1927 = vmul.f32 %v1863, %v1351
  %v1928 = vmul.f32 %v1864, %v1352
  %v1929 = vmul.f32 %v1865, %v1353
  %v1930 = vmul.f32 %v1866, %v1354
  %v1931 = vmul.f32 %v1867, %v1355
  %v1932 = vmul.f32 %v1868, %v1356
  %v1933 = vmul.f32 %v1869, %v1357
  %v1934 = vmul.f32 %v1870, %v1358
  %v1935 = vmul.f32 %v1871, %v1359
  %v1936 = vmul.f32 %v1872, %v1360
  %v1937 = vmul.f32 %v1873, %v1361
  %v1938 = vmul.f32 %v1874, %v1362
  %v1939 = vmul.f32 %v1875, %v1363
  %v1940 = vmul.f32 %v1876, %v1364
  %v1941 = vmul.f32 %v1877, %v1365
  %v1942 = vmul.f32 %v1878, %v1366
  %v1943 = vmul.f32 %v1879, %v1367
  %v1944 = vmul.f32 %v1880, %v1368
  %v1945 = vmul.f32 %v1881, %v1369
  %v1946 = vmul.f32 %v1882, %v1370
  %v1947 = vmul.f32 %v1883, %v1371
  %v1948 = vsub.f32 0.0, %v924
  %v1949 = vsub.f32 0.0, %v925
  %v1950 = vsub.f32 0.0, %v926
  %v1951 = vsub.f32 0.0, %v927
  %v1952 = vsub.f32 0.0, %v928
  %v1953 = vsub.f32 0.0, %v929
  %v1954 = vsub.f32 0.0, %v930
  %v1955 = vsub.f32 0.0, %v931
  %v1956 = vsub.f32 0.0, %v932
  %v1957 = vsub.f32 0.0, %v933
  %v1958 = vsub.f32 0.0, %v934
  %v1959 = vsub.f32 0.0, %v935
  %v1960 = vsub.f32 0.0, %v936
  %v1961 = vsub.f32 0.0, %v937
  %v1962 = vsub.f32 0.0, %v938
  %v1963 = vsub.f32 0.0, %v939
  %v1964 = vsub.f32 0.0, %v940
  %v1965 = vsub.f32 0.0, %v941
  %v1966 = vsub.f32 0.0, %v942
  %v1967 = vsub.f32 0.0, %v943
  %v1968 = vsub.f32 0.0, %v944
  %v1969 = vsub.f32 0.0, %v945
  %v1970 = vsub.f32 0.0, %v946
  %v1971 = vsub.f32 0.0, %v947
  %v1972 = vsub.f32 0.0, %v948
  %v1973 = vsub.f32 0.0, %v949
  %v1974 = vsub.f32 0.0, %v950
  %v1975 = vsub.f32 0.0, %v951
  %v1976 = vsub.f32 0.0, %v952
  %v1977 = vsub.f32 0.0, %v953
  %v1978 = vsub.f32 0.0, %v954
  %v1979 = vsub.f32 0.0, %v955
  %v1980 = vsub.f32 0.0, %v956
  %v1981 = vsub.f32 0.0, %v957
  %v1982 = vsub.f32 0.0, %v958
  %v1983 = vsub.f32 0.0, %v959
  %v1984 = vsub.f32 0.0, %v960
  %v1985 = vsub.f32 0.0, %v961
  %v1986 = vsub.f32 0.0, %v962
  %v1987 = vsub.f32 0.0, %v963
  %v1988 = vsub.f32 0.0, %v964
  %v1989 = vsub.f32 0.0, %v965
  %v1990 = vsub.f32 0.0, %v966
  %v1991 = vsub.f32 0.0, %v967
  %v1992 = vsub.f32 0.0, %v968
  %v1993 = vsub.f32 0.0, %v969
  %v1994 = vsub.f32 0.0, %v970
  %v1995 = vsub.f32 0.0, %v971
  %v1996 = vsub.f32 0.0, %v972
  %v1997 = vsub.f32 0.0, %v973
  %v1998 = vsub.f32 0.0, %v974
  %v1999 = vsub.f32 0.0, %v975
  %v2000 = vsub.f32 0.0, %v976
  %v2001 = vsub.f32 0.0, %v977
  %v2002 = vsub.f32 0.0, %v978
  %v2003 = vsub.f32 0.0, %v979
  %v2004 = vsub.f32 0.0, %v980
  %v2005 = vsub.f32 0.0, %v981
  %v2006 = vsub.f32 0.0, %v982
  %v2007 = vsub.f32 0.0, %v983
  %v2008 = vsub.f32 0.0, %v984
  %v2009 = vsub.f32 0.0, %v985
  %v2010 = vsub.f32 0.0, %v986
  %v2011 = vsub.f32 0.0, %v987
  %v2012 = vmul.f32 %v1948, %v924
  %v2013 = vmul.f32 %v1949, %v925
  %v2014 = vmul.f32 %v1950, %v926
  %v2015 = vmul.f32 %v1951, %v927
  %v2016 = vmul.f32 %v1952, %v928
  %v2017 = vmul.f32 %v1953, %v929
  %v2018 = vmul.f32 %v1954, %v930
  %v2019 = vmul.f32 %v1955, %v931
  %v2020 = vmul.f32 %v1956, %v932
  %v2021 = vmul.f32 %v1957, %v933
  %v2022 = vmul.f32 %v1958, %v934
  %v2023 = vmul.f32 %v1959, %v935
  %v2024 = vmul.f32 %v1960, %v936
  %v2025 = vmul.f32 %v1961, %v937
  %v2026 = vmul.f32 %v1962, %v938
  %v2027 = vmul.f32 %v1963, %v939
  %v2028 = vmul.f32 %v1964, %v940
  %v2029 = vmul.f32 %v1965, %v941
  %v2030 = vmul.f32 %v1966, %v942
  %v2031 = vmul.f32 %v1967, %v943
  %v2032 = vmul.f32 %v1968, %v944
  %v2033 = vmul.f32 %v1969, %v945
  %v2034 = vmul.f32 %v1970, %v946
  %v2035 = vmul.f32 %v1971, %v947
  %v2036 = vmul.f32 %v1972, %v948
  %v2037 = vmul.f32 %v1973, %v949
  %v2038 = vmul.f32 %v1974, %v950
  %v2039 = vmul.f32 %v1975, %v951
  %v2040 = vmul.f32 %v1976, %v952
  %v2041 = vmul.f32 %v1977, %v953
  %v2042 = vmul.f32 %v1978, %v954
  %v2043 = vmul.f32 %v1979, %v955
  %v2044 = vmul.f32 %v1980, %v956
  %v2045 = vmul.f32 %v1981, %v957
  %v2046 = vmul.f32 %v1982, %v958
  %v2047 = vmul.f32 %v1983, %v959
  %v2048 = vmul.f32 %v1984, %v960
  %v2049 = vmul.f32 %v1985, %v961
  %v2050 = vmul.f32 %v1986, %v962
  %v2051 = vmul.f32 %v1987, %v963
  %v2052 = vmul.f32 %v1988, %v964
  %v2053 = vmul.f32 %v1989, %v965
  %v2054 = vmul.f32 %v1990, %v966
  %v2055 = vmul.f32 %v1991, %v967
  %v2056 = vmul.f32 %v1992, %v968
  %v2057 = vmul.f32 %v1993, %v969
  %v2058 = vmul.f32 %v1994, %v970
  %v2059 = vmul.f32 %v1995, %v971
  %v2060 = vmul.f32 %v1996, %v972
  %v2061 = vmul.f32 %v1997, %v973
  %v2062 = vmul.f32 %v1998, %v974
  %v2063 = vmul.f32 %v1999, %v975
  %v2064 = vmul.f32 %v2000, %v976
  %v2065 = vmul.f32 %v2001, %v977
  %v2066 = vmul.f32 %v2002, %v978
  %v2067 = vmul.f32 %v2003, %v979
  %v2068 = vmul.f32 %v2004, %v980
  %v2069 = vmul.f32 %v2005, %v981
  %v2070 = vmul.f32 %v2006, %v982
  %v2071 = vmul.f32 %v2007, %v983
  %v2072 = vmul.f32 %v2008, %v984
  %v2073 = vmul.f32 %v2009, %v985
  %v2074 = vmul.f32 %v2010, %v986
  %v2075 = vmul.f32 %v2011, %v987
  %v2076 = vmul.f32 %v2012, 1.442695
  %v2077 = vpow.pop %v2076
  %v2078 = vmul.f32 %v2013, 1.442695
  %v2079 = vpow.pop %v2078
  %v2080 = vmul.f32 %v2014, 1.442695
  %v2081 = vpow.pop %v2080
  %v2082 = vmul.f32 %v2015, 1.442695
  %v2083 = vpow.pop %v2082
  %v2084 = vmul.f32 %v2016, 1.442695
  %v2085 = vpow.pop %v2084
  %v2086 = vmul.f32 %v2017, 1.442695
  %v2087 = vpow.pop %v2086
  %v2088 = vmul.f32 %v2018, 1.442695
  %v2089 = vpow.pop %v2088
  %v2090 = vmul.f32 %v2019, 1.442695
  %v2091 = vpow.pop %v2090
  %v2092 = vmul.f32 %v2020, 1.442695
  %v2093 = vpow.pop %v2092
  %v2094 = vmul.f32 %v2021, 1.442695
  %v2095 = vpow.pop %v2094
  %v2096 = vmul.f32 %v2022, 1.442695
  %v2097 = vpow.pop %v2096
  %v2098 = vmul.f32 %v2023, 1.442695
  %v2099 = vpow.pop %v2098
  %v2100 = vmul.f32 %v2024, 1.442695
  %v2101 = vpow.pop %v2100
  %v2102 = vmul.f32 %v2025, 1.442695
  %v2103 = vpow.pop %v2102
  %v2104 = vmul.f32 %v2026, 1.442695
  %v2105 = vpow.pop %v2104
  %v2106 = vmul.f32 %v2027, 1.442695
  %v2107 = vpow.pop %v2106
  %v2108 = vmul.f32 %v2028, 1.442695
  %v2109 = vpow.pop %v2108
  %v2110 = vmul.f32 %v2029, 1.442695
  %v2111 = vpow.pop %v2110
  %v2112 = vmul.f32 %v2030, 1.442695
  %v2113 = vpow.pop %v2112
  %v2114 = vmul.f32 %v2031, 1.442695
  %v2115 = vpow.pop %v2114
  %v2116 = vmul.f32 %v2032, 1.442695
  %v2117 = vpow.pop %v2116
  %v2118 = vmul.f32 %v2033, 1.442695
  %v2119 = vpow.pop %v2118
  %v2120 = vmul.f32 %v2034, 1.442695
  %v2121 = vpow.pop %v2120
  %v2122 = vmul.f32 %v2035, 1.442695
  %v2123 = vpow.pop %v2122
  %v2124 = vmul.f32 %v2036, 1.442695
  %v2125 = vpow.pop %v2124
  %v2126 = vmul.f32 %v2037, 1.442695
  %v2127 = vpow.pop %v2126
  %v2128 = vmul.f32 %v2038, 1.442695
  %v2129 = vpow.pop %v2128
  %v2130 = vmul.f32 %v2039, 1.442695
  %v2131 = vpow.pop %v2130
  %v2132 = vmul.f32 %v2040, 1.442695
  %v2133 = vpow.pop %v2132
  %v2134 = vmul.f32 %v2041, 1.442695
  %v2135 = vpow.pop %v2134
  %v2136 = vmul.f32 %v2042, 1.442695
  %v2137 = vpow.pop %v2136
  %v2138 = vmul.f32 %v2043, 1.442695
  %v2139 = vpow.pop %v2138
  %v2140 = vmul.f32 %v2044, 1.442695
  %v2141 = vpow.pop %v2140
  %v2142 = vmul.f32 %v2045, 1.442695
  %v2143 = vpow.pop %v2142
  %v2144 = vmul.f32 %v2046, 1.442695
  %v2145 = vpow.pop %v2144
  %v2146 = vmul.f32 %v2047, 1.442695
  %v2147 = vpow.pop %v2146
  %v2148 = vmul.f32 %v2048, 1.442695
  %v2149 = vpow.pop %v2148
  %v2150 = vmul.f32 %v2049, 1.442695
  %v2151 = vpow.pop %v2150
  %v2152 = vmul.f32 %v2050, 1.442695
  %v2153 = vpow.pop %v2152
  %v2154 = vmul.f32 %v2051, 1.442695
  %v2155 = vpow.pop %v2154
  %v2156 = vmul.f32 %v2052, 1.442695
  %v2157 = vpow.pop %v2156
  %v2158 = vmul.f32 %v2053, 1.442695
  %v2159 = vpow.pop %v2158
  %v2160 = vmul.f32 %v2054, 1.442695
  %v2161 = vpow.pop %v2160
  %v2162 = vmul.f32 %v2055, 1.442695
  %v2163 = vpow.pop %v2162
  %v2164 = vmul.f32 %v2056, 1.442695
  %v2165 = vpow.pop %v2164
  %v2166 = vmul.f32 %v2057, 1.442695
  %v2167 = vpow.pop %v2166
  %v2168 = vmul.f32 %v2058, 1.442695
  %v2169 = vpow.pop %v2168
  %v2170 = vmul.f32 %v2059, 1.442695
  %v2171 = vpow.pop %v2170
  %v2172 = vmul.f32 %v2060, 1.442695
  %v2173 = vpow.pop %v2172
  %v2174 = vmul.f32 %v2061, 1.442695
  %v2175 = vpow.pop %v2174
  %v2176 = vmul.f32 %v2062, 1.442695
  %v2177 = vpow.pop %v2176
  %v2178 = vmul.f32 %v2063, 1.442695
  %v2179 = vpow.pop %v2178
  %v2180 = vmul.f32 %v2064, 1.442695
  %v2181 = vpow.pop %v2180
  %v2182 = vmul.f32 %v2065, 1.442695
  %v2183 = vpow.pop %v2182
  %v2184 = vmul.f32 %v2066, 1.442695
  %v2185 = vpow.pop %v2184
  %v2186 = vmul.f32 %v2067, 1.442695
  %v2187 = vpow.pop %v2186
  %v2188 = vmul.f32 %v2068, 1.442695
  %v2189 = vpow.pop %v2188
  %v2190 = vmul.f32 %v2069, 1.442695
  %v2191 = vpow.pop %v2190
  %v2192 = vmul.f32 %v2070, 1.442695
  %v2193 = vpow.pop %v2192
  %v2194 = vmul.f32 %v2071, 1.442695
  %v2195 = vpow.pop %v2194
  %v2196 = vmul.f32 %v2072, 1.442695
  %v2197 = vpow.pop %v2196
  %v2198 = vmul.f32 %v2073, 1.442695
  %v2199 = vpow.pop %v2198
  %v2200 = vmul.f32 %v2074, 1.442695
  %v2201 = vpow.pop %v2200
  %v2202 = vmul.f32 %v2075, 1.442695
  %v2203 = vpow.pop %v2202
  %v2204 = vmul.f32 %v1884, %v2077
  %v2205 = vmul.f32 %v1885, %v2079
  %v2206 = vmul.f32 %v1886, %v2081
  %v2207 = vmul.f32 %v1887, %v2083
  %v2208 = vmul.f32 %v1888, %v2085
  %v2209 = vmul.f32 %v1889, %v2087
  %v2210 = vmul.f32 %v1890, %v2089
  %v2211 = vmul.f32 %v1891, %v2091
  %v2212 = vmul.f32 %v1892, %v2093
  %v2213 = vmul.f32 %v1893, %v2095
  %v2214 = vmul.f32 %v1894, %v2097
  %v2215 = vmul.f32 %v1895, %v2099
  %v2216 = vmul.f32 %v1896, %v2101
  %v2217 = vmul.f32 %v1897, %v2103
  %v2218 = vmul.f32 %v1898, %v2105
  %v2219 = vmul.f32 %v1899, %v2107
  %v2220 = vmul.f32 %v1900, %v2109
  %v2221 = vmul.f32 %v1901, %v2111
  %v2222 = vmul.f32 %v1902, %v2113
  %v2223 = vmul.f32 %v1903, %v2115
  %v2224 = vmul.f32 %v1904, %v2117
  %v2225 = vmul.f32 %v1905, %v2119
  %v2226 = vmul.f32 %v1906, %v2121
  %v2227 = vmul.f32 %v1907, %v2123
  %v2228 = vmul.f32 %v1908, %v2125
  %v2229 = vmul.f32 %v1909, %v2127
  %v2230 = vmul.f32 %v1910, %v2129
  %v2231 = vmul.f32 %v1911, %v2131
  %v2232 = vmul.f32 %v1912, %v2133
  %v2233 = vmul.f32 %v1913, %v2135
  %v2234 = vmul.f32 %v1914, %v2137
  %v2235 = vmul.f32 %v1915, %v2139
  %v2236 = vmul.f32 %v1916, %v2141
  %v2237 = vmul.f32 %v1917, %v2143
  %v2238 = vmul.f32 %v1918, %v2145
  %v2239 = vmul.f32 %v1919, %v2147
  %v2240 = vmul.f32 %v1920, %v2149
  %v2241 = vmul.f32 %v1921, %v2151
  %v2242 = vmul.f32 %v1922, %v2153
  %v2243 = vmul.f32 %v1923, %v2155
  %v2244 = vmul.f32 %v1924, %v2157
  %v2245 = vmul.f32 %v1925, %v2159
  %v2246 = vmul.f32 %v1926, %v2161
  %v2247 = vmul.f32 %v1927, %v2163
  %v2248 = vmul.f32 %v1928, %v2165
  %v2249 = vmul.f32 %v1929, %v2167
  %v2250 = vmul.f32 %v1930, %v2169
  %v2251 = vmul.f32 %v1931, %v2171
  %v2252 = vmul.f32 %v1932, %v2173
  %v2253 = vmul.f32 %v1933, %v2175
  %v2254 = vmul.f32 %v1934, %v2177
  %v2255 = vmul.f32 %v1935, %v2179
  %v2256 = vmul.f32 %v1936, %v2181
  %v2257 = vmul.f32 %v1937, %v2183
  %v2258 = vmul.f32 %v1938, %v2185
  %v2259 = vmul.f32 %v1939, %v2187
  %v2260 = vmul.f32 %v1940, %v2189
  %v2261 = vmul.f32 %v1941, %v2191
  %v2262 = vmul.f32 %v1942, %v2193
  %v2263 = vmul.f32 %v1943, %v2195
  %v2264 = vmul.f32 %v1944, %v2197
  %v2265 = vmul.f32 %v1945, %v2199
  %v2266 = vmul.f32 %v1946, %v2201
  %v2267 = vmul.f32 %v1947, %v2203
  %v2268 = vsub.f32 1.0, %v2204
  %v2269 = vsub.f32 1.0, %v2205
  %v2270 = vsub.f32 1.0, %v2206
  %v2271 = vsub.f32 1.0, %v2207
  %v2272 = vsub.f32 1.0, %v2208
  %v2273 = vsub.f32 1.0, %v2209
  %v2274 = vsub.f32 1.0, %v2210
  %v2275 = vsub.f32 1.0, %v2211
  %v2276 = vsub.f32 1.0, %v2212
  %v2277 = vsub.f32 1.0, %v2213
  %v2278 = vsub.f32 1.0, %v2214
  %v2279 = vsub.f32 1.0, %v2215
  %v2280 = vsub.f32 1.0, %v2216
  %v2281 = vsub.f32 1.0, %v2217
  %v2282 = vsub.f32 1.0, %v2218
  %v2283 = vsub.f32 1.0, %v2219
  %v2284 = vsub.f32 1.0, %v2220
  %v2285 = vsub.f32 1.0, %v2221
  %v2286 = vsub.f32 1.0, %v2222
  %v2287 = vsub.f32 1.0, %v2223
  %v2288 = vsub.f32 1.0, %v2224
  %v2289 = vsub.f32 1.0, %v2225
  %v2290 = vsub.f32 1.0, %v2226
  %v2291 = vsub.f32 1.0, %v2227
  %v2292 = vsub.f32 1.0, %v2228
  %v2293 = vsub.f32 1.0, %v2229
  %v2294 = vsub.f32 1.0, %v2230
  %v2295 = vsub.f32 1.0, %v2231
  %v2296 = vsub.f32 1.0, %v2232
  %v2297 = vsub.f32 1.0, %v2233
  %v2298 = vsub.f32 1.0, %v2234
  %v2299 = vsub.f32 1.0, %v2235
  %v2300 = vsub.f32 1.0, %v2236
  %v2301 = vsub.f32 1.0, %v2237
  %v2302 = vsub.f32 1.0, %v2238
  %v2303 = vsub.f32 1.0, %v2239
  %v2304 = vsub.f32 1.0, %v2240
  %v2305 = vsub.f32 1.0, %v2241
  %v2306 = vsub.f32 1.0, %v2242
  %v2307 = vsub.f32 1.0, %v2243
  %v2308 = vsub.f32 1.0, %v2244
  %v2309 = vsub.f32 1.0, %v2245
  %v2310 = vsub.f32 1.0, %v2246
  %v2311 = vsub.f32 1.0, %v2247
  %v2312 = vsub.f32 1.0, %v2248
  %v2313 = vsub.f32 1.0, %v2249
  %v2314 = vsub.f32 1.0, %v2250
  %v2315 = vsub.f32 1.0, %v2251
  %v2316 = vsub.f32 1.0, %v2252
  %v2317 = vsub.f32 1.0, %v2253
  %v2318 = vsub.f32 1.0, %v2254
  %v2319 = vsub.f32 1.0, %v2255
  %v2320 = vsub.f32 1.0, %v2256
  %v2321 = vsub.f32 1.0, %v2257
  %v2322 = vsub.f32 1.0, %v2258
  %v2323 = vsub.f32 1.0, %v2259
  %v2324 = vsub.f32 1.0, %v2260
  %v2325 = vsub.f32 1.0, %v2261
  %v2326 = vsub.f32 1.0, %v2262
  %v2327 = vsub.f32 1.0, %v2263
  %v2328 = vsub.f32 1.0, %v2264
  %v2329 = vsub.f32 1.0, %v2265
  %v2330 = vsub.f32 1.0, %v2266
  %v2331 = vsub.f32 1.0, %v2267
  %v2332 = vmul.f32 %v860, %v2268
  %v2333 = vmul.f32 %v861, %v2269
  %v2334 = vmul.f32 %v862, %v2270
  %v2335 = vmul.f32 %v863, %v2271
  %v2336 = vmul.f32 %v864, %v2272
  %v2337 = vmul.f32 %v865, %v2273
  %v2338 = vmul.f32 %v866, %v2274
  %v2339 = vmul.f32 %v867, %v2275
  %v2340 = vmul.f32 %v868, %v2276
  %v2341 = vmul.f32 %v869, %v2277
  %v2342 = vmul.f32 %v870, %v2278
  %v2343 = vmul.f32 %v871, %v2279
  %v2344 = vmul.f32 %v872, %v2280
  %v2345 = vmul.f32 %v873, %v2281
  %v2346 = vmul.f32 %v874, %v2282
  %v2347 = vmul.f32 %v875, %v2283
  %v2348 = vmul.f32 %v876, %v2284
  %v2349 = vmul.f32 %v877, %v2285
  %v2350 = vmul.f32 %v878, %v2286
  %v2351 = vmul.f32 %v879, %v2287
  %v2352 = vmul.f32 %v880, %v2288
  %v2353 = vmul.f32 %v881, %v2289
  %v2354 = vmul.f32 %v882, %v2290
  %v2355 = vmul.f32 %v883, %v2291
  %v2356 = vmul.f32 %v884, %v2292
  %v2357 = vmul.f32 %v885, %v2293
  %v2358 = vmul.f32 %v886, %v2294
  %v2359 = vmul.f32 %v887, %v2295
  %v2360 = vmul.f32 %v888, %v2296
  %v2361 = vmul.f32 %v889, %v2297
  %v2362 = vmul.f32 %v890, %v2298
  %v2363 = vmul.f32 %v891, %v2299
  %v2364 = vmul.f32 %v892, %v2300
  %v2365 = vmul.f32 %v893, %v2301
  %v2366 = vmul.f32 %v894, %v2302
  %v2367 = vmul.f32 %v895, %v2303
  %v2368 = vmul.f32 %v896, %v2304
  %v2369 = vmul.f32 %v897, %v2305
  %v2370 = vmul.f32 %v898, %v2306
  %v2371 = vmul.f32 %v899, %v2307
  %v2372 = vmul.f32 %v900, %v2308
  %v2373 = vmul.f32 %v901, %v2309
  %v2374 = vmul.f32 %v902, %v2310
  %v2375 = vmul.f32 %v903, %v2311
  %v2376 = vmul.f32 %v904, %v2312
  %v2377 = vmul.f32 %v905, %v2313
  %v2378 = vmul.f32 %v906, %v2314
  %v2379 = vmul.f32 %v907, %v2315
  %v2380 = vmul.f32 %v908, %v2316
  %v2381 = vmul.f32 %v909, %v2317
  %v2382 = vmul.f32 %v910, %v2318
  %v2383 = vmul.f32 %v911, %v2319
  %v2384 = vmul.f32 %v912, %v2320
  %v2385 = vmul.f32 %v913, %v2321
  %v2386 = vmul.f32 %v914, %v2322
  %v2387 = vmul.f32 %v915, %v2323
  %v2388 = vmul.f32 %v916, %v2324
  %v2389 = vmul.f32 %v917, %v2325
  %v2390 = vmul.f32 %v918, %v2326
  %v2391 = vmul.f32 %v919, %v2327
  %v2392 = vmul.f32 %v920, %v2328
  %v2393 = vmul.f32 %v921, %v2329
  %v2394 = vmul.f32 %v922, %v2330
  %v2395 = vmul.f32 %v923, %v2331
  %v2396 = vadd.f32 %v2332, 1.0
  %v2397 = vadd.f32 %v2333, 1.0
  %v2398 = vadd.f32 %v2334, 1.0
  %v2399 = vadd.f32 %v2335, 1.0
  %v2400 = vadd.f32 %v2336, 1.0
  %v2401 = vadd.f32 %v2337, 1.0
  %v2402 = vadd.f32 %v2338, 1.0
  %v2403 = vadd.f32 %v2339, 1.0
  %v2404 = vadd.f32 %v2340, 1.0
  %v2405 = vadd.f32 %v2341, 1.0
  %v2406 = vadd.f32 %v2342, 1.0
  %v2407 = vadd.f32 %v2343, 1.0
  %v2408 = vadd.f32 %v2344, 1.0
  %v2409 = vadd.f32 %v2345, 1.0
  %v2410 = vadd.f32 %v2346, 1.0
  %v2411 = vadd.f32 %v2347, 1.0
  %v2412 = vadd.f32 %v2348, 1.0
  %v2413 = vadd.f32 %v2349, 1.0
  %v2414 = vadd.f32 %v2350, 1.0
  %v2415 = vadd.f32 %v2351, 1.0
  %v2416 = vadd.f32 %v2352, 1.0
  %v2417 = vadd.f32 %v2353, 1.0
  %v2418 = vadd.f32 %v2354, 1.0
  %v2419 = vadd.f32 %v2355, 1.0
  %v2420 = vadd.f32 %v2356, 1.0
  %v2421 = vadd.f32 %v2357, 1.0
  %v2422 = vadd.f32 %v2358, 1.0
  %v2423 = vadd.f32 %v2359, 1.0
  %v2424 = vadd.f32 %v2360, 1.0
  %v2425 = vadd.f32 %v2361, 1.0
  %v2426 = vadd.f32 %v2362, 1.0
  %v2427 = vadd.f32 %v2363, 1.0
  %v2428 = vadd.f32 %v2364, 1.0
  %v2429 = vadd.f32 %v2365, 1.0
  %v2430 = vadd.f32 %v2366, 1.0
  %v2431 = vadd.f32 %v2367, 1.0
  %v2432 = vadd.f32 %v2368, 1.0
  %v2433 = vadd.f32 %v2369, 1.0
  %v2434 = vadd.f32 %v2370, 1.0
  %v2435 = vadd.f32 %v2371, 1.0
  %v2436 = vadd.f32 %v2372, 1.0
  %v2437 = vadd.f32 %v2373, 1.0
  %v2438 = vadd.f32 %v2374, 1.0
  %v2439 = vadd.f32 %v2375, 1.0
  %v2440 = vadd.f32 %v2376, 1.0
  %v2441 = vadd.f32 %v2377, 1.0
  %v2442 = vadd.f32 %v2378, 1.0
  %v2443 = vadd.f32 %v2379, 1.0
  %v2444 = vadd.f32 %v2380, 1.0
  %v2445 = vadd.f32 %v2381, 1.0
  %v2446 = vadd.f32 %v2382, 1.0
  %v2447 = vadd.f32 %v2383, 1.0
  %v2448 = vadd.f32 %v2384, 1.0
  %v2449 = vadd.f32 %v2385, 1.0
  %v2450 = vadd.f32 %v2386, 1.0
  %v2451 = vadd.f32 %v2387, 1.0
  %v2452 = vadd.f32 %v2388, 1.0
  %v2453 = vadd.f32 %v2389, 1.0
  %v2454 = vadd.f32 %v2390, 1.0
  %v2455 = vadd.f32 %v2391, 1.0
  %v2456 = vadd.f32 %v2392, 1.0
  %v2457 = vadd.f32 %v2393, 1.0
  %v2458 = vadd.f32 %v2394, 1.0
  %v2459 = vadd.f32 %v2395, 1.0
  %v2460 = vmul.f32 %v668, %v2396
  %v2461 = vmul.f32 %v669, %v2397
  %v2462 = vmul.f32 %v670, %v2398
  %v2463 = vmul.f32 %v671, %v2399
  %v2464 = vmul.f32 %v672, %v2400
  %v2465 = vmul.f32 %v673, %v2401
  %v2466 = vmul.f32 %v674, %v2402
  %v2467 = vmul.f32 %v675, %v2403
  %v2468 = vmul.f32 %v676, %v2404
  %v2469 = vmul.f32 %v677, %v2405
  %v2470 = vmul.f32 %v678, %v2406
  %v2471 = vmul.f32 %v679, %v2407
  %v2472 = vmul.f32 %v680, %v2408
  %v2473 = vmul.f32 %v681, %v2409
  %v2474 = vmul.f32 %v682, %v2410
  %v2475 = vmul.f32 %v683, %v2411
  %v2476 = vmul.f32 %v684, %v2412
  %v2477 = vmul.f32 %v685, %v2413
  %v2478 = vmul.f32 %v686, %v2414
  %v2479 = vmul.f32 %v687, %v2415
  %v2480 = vmul.f32 %v688, %v2416
  %v2481 = vmul.f32 %v689, %v2417
  %v2482 = vmul.f32 %v690, %v2418
  %v2483 = vmul.f32 %v691, %v2419
  %v2484 = vmul.f32 %v692, %v2420
  %v2485 = vmul.f32 %v693, %v2421
  %v2486 = vmul.f32 %v694, %v2422
  %v2487 = vmul.f32 %v695, %v2423
  %v2488 = vmul.f32 %v696, %v2424
  %v2489 = vmul.f32 %v697, %v2425
  %v2490 = vmul.f32 %v698, %v2426
  %v2491 = vmul.f32 %v699, %v2427
  %v2492 = vmul.f32 %v700, %v2428
  %v2493 = vmul.f32 %v701, %v2429
  %v2494 = vmul.f32 %v702, %v2430
  %v2495 = vmul.f32 %v703, %v2431
  %v2496 = vmul.f32 %v704, %v2432
  %v2497 = vmul.f32 %v705, %v2433
  %v2498 = vmul.f32 %v706, %v2434
  %v2499 = vmul.f32 %v707, %v2435
  %v2500 = vmul.f32 %v708, %v2436
  %v2501 = vmul.f32 %v709, %v2437
  %v2502 = vmul.f32 %v710, %v2438
  %v2503 = vmul.f32 %v711, %v2439
  %v2504 = vmul.f32 %v712, %v2440
  %v2505 = vmul.f32 %v713, %v2441
  %v2506 = vmul.f32 %v714, %v2442
  %v2507 = vmul.f32 %v715, %v2443
  %v2508 = vmul.f32 %v716, %v2444
  %v2509 = vmul.f32 %v717, %v2445
  %v2510 = vmul.f32 %v718, %v2446
  %v2511 = vmul.f32 %v719, %v2447
  %v2512 = vmul.f32 %v720, %v2448
  %v2513 = vmul.f32 %v721, %v2449
  %v2514 = vmul.f32 %v722, %v2450
  %v2515 = vmul.f32 %v723, %v2451
  %v2516 = vmul.f32 %v724, %v2452
  %v2517 = vmul.f32 %v725, %v2453
  %v2518 = vmul.f32 %v726, %v2454
  %v2519 = vmul.f32 %v727, %v2455
  %v2520 = vmul.f32 %v728, %v2456
  %v2521 = vmul.f32 %v729, %v2457
  %v2522 = vmul.f32 %v730, %v2458
  %v2523 = vmul.f32 %v731, %v2459
  %2524 = vst.msk [vmem:[%s3] sm:$0xff] %vm86, %v2460
  %2525 = vst.msk [vmem:[%s3 + $0x8] sm:$0xff] %vm86, %v2461
  %2526 = vst.msk [vmem:[%s3 + $0x10] sm:$0xff] %vm86, %v2462
  %2527 = vst.msk [vmem:[%s3 + $0x18] sm:$0xff] %vm86, %v2463
  %2528 = vst.msk [vmem:[%s3 + $0x20] sm:$0xff] %vm86, %v2464
  %2529 = vst.msk [vmem:[%s3 + $0x28] sm:$0xff] %vm86, %v2465
  %2530 = vst.msk [vmem:[%s3 + $0x30] sm:$0xff] %vm86, %v2466
  %2531 = vst.msk [vmem:[%s3 + $0x38] sm:$0xff] %vm86, %v2467
  %2532 = vst.msk [vmem:[%s3 + $0x40] sm:$0xff] %vm86, %v2468
  %2533 = vst.msk [vmem:[%s3 + $0x48] sm:$0xff] %vm86, %v2469
  %2534 = vst.msk [vmem:[%s3 + $0x50] sm:$0xff] %vm86, %v2470
  %2535 = vst.msk [vmem:[%s3 + $0x58] sm:$0xff] %vm86, %v2471
  %2536 = vst.msk [vmem:[%s3 + $0x60] sm:$0xff] %vm86, %v2472
  %2537 = vst.msk [vmem:[%s3 + $0x68] sm:$0xff] %vm86, %v2473
  %2538 = vst.msk [vmem:[%s3 + $0x70] sm:$0xff] %vm86, %v2474
  %2539 = vst.msk [vmem:[%s3 + $0x78] sm:$0xff] %vm86, %v2475
  %2540 = vst.msk [vmem:[%s3 + $0x80] sm:$0xff] %vm86, %v2476
  %2541 = vst.msk [vmem:[%s3 + $0x88] sm:$0xff] %vm86, %v2477
  %2542 = vst.msk [vmem:[%s3 + $0x90] sm:$0xff] %vm86, %v2478
  %2543 = vst.msk [vmem:[%s3 + $0x98] sm:$0xff] %vm86, %v2479
  %2544 = vst.msk [vmem:[%s3 + $0xa0] sm:$0xff] %vm86, %v2480
  %2545 = vst.msk [vmem:[%s3 + $0xa8] sm:$0xff] %vm86, %v2481
  %2546 = vst.msk [vmem:[%s3 + $0xb0] sm:$0xff] %vm86, %v2482
  %2547 = vst.msk [vmem:[%s3 + $0xb8] sm:$0xff] %vm86, %v2483
  %2548 = vst.msk [vmem:[%s3 + $0xc0] sm:$0xff] %vm86, %v2484
  %2549 = vst.msk [vmem:[%s3 + $0xc8] sm:$0xff] %vm86, %v2485
  %2550 = vst.msk [vmem:[%s3 + $0xd0] sm:$0xff] %vm86, %v2486
  %2551 = vst.msk [vmem:[%s3 + $0xd8] sm:$0xff] %vm86, %v2487
  %2552 = vst.msk [vmem:[%s3 + $0xe0] sm:$0xff] %vm86, %v2488
  %2553 = vst.msk [vmem:[%s3 + $0xe8] sm:$0xff] %vm86, %v2489
  %2554 = vst.msk [vmem:[%s3 + $0xf0] sm:$0xff] %vm86, %v2490
  %2555 = vst.msk [vmem:[%s3 + $0xf8] sm:$0xff] %vm86, %v2491
  %2556 = vst.msk [vmem:[%s3 + $0x100] sm:$0xff] %vm86, %v2492
  %2557 = vst.msk [vmem:[%s3 + $0x108] sm:$0xff] %vm86, %v2493
  %2558 = vst.msk [vmem:[%s3 + $0x110] sm:$0xff] %vm86, %v2494
  %2559 = vst.msk [vmem:[%s3 + $0x118] sm:$0xff] %vm86, %v2495
  %2560 = vst.msk [vmem:[%s3 + $0x120] sm:$0xff] %vm86, %v2496
  %2561 = vst.msk [vmem:[%s3 + $0x128] sm:$0xff] %vm86, %v2497
  %2562 = vst.msk [vmem:[%s3 + $0x130] sm:$0xff] %vm86, %v2498
  %2563 = vst.msk [vmem:[%s3 + $0x138] sm:$0xff] %vm86, %v2499
  %2564 = vst.msk [vmem:[%s3 + $0x140] sm:$0xff] %vm86, %v2500
  %2565 = vst.msk [vmem:[%s3 + $0x148] sm:$0xff] %vm86, %v2501
  %2566 = vst.msk [vmem:[%s3 + $0x150] sm:$0xff] %vm86, %v2502
  %2567 = vst.msk [vmem:[%s3 + $0x158] sm:$0xff] %vm86, %v2503
  %2568 = vst.msk [vmem:[%s3 + $0x160] sm:$0xff] %vm86, %v2504
  %2569 = vst.msk [vmem:[%s3 + $0x168] sm:$0xff] %vm86, %v2505
  %2570 = vst.msk [vmem:[%s3 + $0x170] sm:$0xff] %vm86, %v2506
  %2571 = vst.msk [vmem:[%s3 + $0x178] sm:$0xff] %vm86, %v2507
  %2572 = vst.msk [vmem:[%s3 + $0x180] sm:$0xff] %vm86, %v2508
  %2573 = vst.msk [vmem:[%s3 + $0x188] sm:$0xff] %vm86, %v2509
  %2574 = vst.msk [vmem:[%s3 + $0x190] sm:$0xff] %vm86, %v2510
  %2575 = vst.msk [vmem:[%s3 + $0x198] sm:$0xff] %vm86, %v2511
  %2576 = vst.msk [vmem:[%s3 + $0x1a0] sm:$0xff] %vm86, %v2512
  %2577 = vst.msk [vmem:[%s3 + $0x1a8] sm:$0xff] %vm86, %v2513
  %2578 = vst.msk [vmem:[%s3 + $0x1b0] sm:$0xff] %vm86, %v2514
  %2579 = vst.msk [vmem:[%s3 + $0x1b8] sm:$0xff] %vm86, %v2515
  %2580 = vst.msk [vmem:[%s3 + $0x1c0] sm:$0xff] %vm86, %v2516
  %2581 = vst.msk [vmem:[%s3 + $0x1c8] sm:$0xff] %vm86, %v2517
  %2582 = vst.msk [vmem:[%s3 + $0x1d0] sm:$0xff] %vm86, %v2518
  %2583 = vst.msk [vmem:[%s3 + $0x1d8] sm:$0xff] %vm86, %v2519
  %2584 = vst.msk [vmem:[%s3 + $0x1e0] sm:$0xff] %vm86, %v2520
  %2585 = vst.msk [vmem:[%s3 + $0x1e8] sm:$0xff] %vm86, %v2521
  %2586 = vst.msk [vmem:[%s3 + $0x1f0] sm:$0xff] %vm86, %v2522
  %2587 = vst.msk [vmem:[%s3 + $0x1f8] sm:$0xff] %vm86, %v2523
  // Predicated region
  $region14: #{tpu_custom_call.1} parent=0 // pred_check
    _
  $region15: #{tpu_custom_call.1} parent=0 // pred_check_branch
    %2589 = sbr.rel (0) target = $region17
  $region16: #{tpu_custom_call.1} parent=0 // pred_region
    _
  $region17: #{tpu_custom_call.1} parent=0 // pred_fallthru
    _
  // Predicated region
  $region18: #{tpu_custom_call.1} parent=0 // pred_check
    _
  $region19: #{tpu_custom_call.1} parent=0 // pred_check_branch
    %2591 = sbr.rel (0) target = $region21
  $region20: #{tpu_custom_call.1} parent=0 // pred_region
    _
  $region21: #{tpu_custom_call.1} parent=0 // pred_fallthru
    _

</llo_original>
